<compile_context>
chip_gen: v7x
topology: tpu7x:2x2x1
jax: 0.10.0
libtpu: 0.0.40
codegen_flags: <defaults>
</compile_context>

<pallas_src>
import functools
import math

import jax
import jax.numpy as jnp
from jax.experimental import pallas as pl
from jax.experimental.pallas import tpu as pltpu


# ----------------------------------------------------------------------------
# Fully fused forward kernel
# ----------------------------------------------------------------------------
def _fused_forward_kernel(has_res, *refs):
    """refs = (x_ref, a_ref, <layer param refs...>, o_ref).

    Layer params (consumed in order):
      gc1:            W, scale, shift
      per res-block:  [res W, res scale, res shift]   (only if 'diff' residual)
                      W1, scale1, shift1, W2, scale2, shift2
      gc4:            W, bias
    scale/shift already fold the GConv bias and the (inference) BN affine.
    """
    x_ref, a_ref, o_ref = refs[0], refs[1], refs[-1]
    prm = iter(refs[2:-1])
    A = a_ref[...]                           # block-diag normalized adjacency (M, M)

    def gconv(h, w_ref, s_ref, sh_ref, relu):
        y = jnp.dot(h, w_ref[...], preferred_element_type=jnp.float32)   # (M, Cout)
        z = jnp.dot(A, y, preferred_element_type=jnp.float32)            # (M, Cout)
        z = z * s_ref[...] + sh_ref[...]     # folded GConv-bias + BN affine
        if relu:
            z = jnp.maximum(z, 0.0)
        return z

    # gc1 -> bn1 -> relu            (dropout == identity in eval mode)
    h = gconv(x_ref[...], next(prm), next(prm), next(prm), True)

    # the three GCNResidualBlockBN_New blocks
    for diff_residual in has_res:
        if diff_residual:                    # 'diff': GConv -> BN, no relu
            residual = gconv(h, next(prm), next(prm), next(prm), False)
        else:                                # 'same': identity
            residual = h
        t = gconv(h, next(prm), next(prm), next(prm), True)
        h = gconv(t, next(prm), next(prm), next(prm), True) + residual

    # gc4: plain GConv + bias (no BN / relu); pretrain=False so no gc5.
    w4_ref, b4_ref = next(prm), next(prm)
    y = jnp.dot(h, w4_ref[...], preferred_element_type=jnp.float32)
    z = jnp.dot(A, y, preferred_element_type=jnp.float32) + b4_ref[...]
    o_ref[...] = z.astype(o_ref.dtype)


# ----------------------------------------------------------------------------
# One-time (hoisted) parameter folding for the fused kernel
# ----------------------------------------------------------------------------
def normalize_undigraph(adj_param):
    """normalize_undigraph_batch for a (1, N, N) adjacency -> (N, N) D^-1/2 A D^-1/2."""
    A = adj_param[0]
    Dl = jnp.sum(A, axis=0)
    dinv = jnp.where(Dl > 0, 1.0 / jnp.sqrt(jnp.where(Dl > 0, Dl, 1.0)), 0.0)
    return dinv[:, None] * A * dinv[None, :]


def prepare_fused_params(params, batch_tile):
    """Fold adjacency norm, GConv bias and BN affine once, outside the forward."""
    A = normalize_undigraph(params["adj"])                       # (N, N)
    A_bd = jnp.kron(jnp.eye(batch_tile, dtype=A.dtype), A)       # (bt*N, bt*N)

    def fold(w, b, scale, shift):
        # scale*(A@(xW) + b) + shift  ==  scale*(A@(xW)) + (scale*b + shift)
        s_t = jnp.tile(scale, (batch_tile, 1))
        sh_t = jnp.tile(scale * b + shift, (batch_tile, 1))
        return [w, s_t, sh_t]

    flat = [A_bd]
    flat += fold(params["gc1_w"], params["gc1_b"],
                 params["bn1_scale"], params["bn1_shift"])
    has_res = []
    for name in ("block2", "block3", "block4"):
        p = params[name]
        diff = "res_w" in p
        has_res.append(diff)
        if diff:
            flat += fold(p["res_w"], p["res_b"], p["res_bn_scale"], p["res_bn_shift"])
        flat += fold(p["w1"], p["b1"], p["bn1_scale"], p["bn1_shift"])
        flat += fold(p["w2"], p["b2"], p["bn2_scale"], p["bn2_shift"])
    flat += [params["gc4_w"], params["gc4_b"]]
    return flat, tuple(has_res), batch_tile


# ----------------------------------------------------------------------------
# Forward: a single pallas_call
# ----------------------------------------------------------------------------
def spatial_pose_graph_net(x, fused):
    flat, has_res, bt = fused
    B, N, nfeat = x.shape
    assert B % bt == 0, (B, bt)
    # Note: if bt < B, (bt*N) should be a multiple of 8 to satisfy the block
    # tiling constraint; with bt == B the block equals the full array (OK).
    n_emb = flat[-2].shape[1]                 # gc4 weight is (nhid[3], n_embedding)
    M = bt * N

    x2 = x.reshape(B * N, nfeat)              # fold batch into the matmul M dim

    in_specs = [pl.BlockSpec((M, nfeat), lambda i: (i, 0))]       # x: per batch chunk
    for p in flat:                                                # resident constants
        in_specs.append(pl.BlockSpec(p.shape, lambda i: (0, 0)))

    out = pl.pallas_call(
        functools.partial(_fused_forward_kernel, has_res),
        out_shape=jax.ShapeDtypeStruct((B * N, n_emb), jnp.float32),
        grid=(B // bt,),
        in_specs=in_specs,
        out_specs=pl.BlockSpec((M, n_emb), lambda i: (i, 0)),
        compiler_params=pltpu.CompilerParams(
            # batch-chunk axis: lets v7x split chunks across its 2 TensorCores
            dimension_semantics=("parallel",)),
    )(x2, *flat)
    return out.reshape(B, N, n_emb)


# ----------------------------------------------------------------------------
# Parameter construction (deterministic, matches module __init__ shapes)
# ----------------------------------------------------------------------------
def xavier_uniform(key, fan_in, fan_out):
    limit = math.sqrt(6.0 / (fan_in + fan_out))
    return jax.random.uniform(key, (fan_in, fan_out), jnp.float32, -limit, limit)


def init_gconv(key, cin, cout):
    kw, kb = jax.random.split(key)
    w = xavier_uniform(kw, cin, cout)                      # stored as (in, out) = W^T
    bound = 1.0 / math.sqrt(cin)
    b = jax.random.uniform(kb, (1, cout), jnp.float32, -bound, bound)
    return w, b


def bn_params(num_joints, c, eps=1e-5):
    # nn.BatchNorm1d defaults at init, inference mode:
    # gamma=1, beta=0, running_mean=0, running_var=1
    scale = jnp.full((num_joints, c), 1.0 / math.sqrt(1.0 + eps), jnp.float32)
    shift = jnp.zeros((num_joints, c), jnp.float32)
    return scale, shift


def build_adjacency(num_joints=17):
    edges = [(0, 1), (0, 4), (1, 2), (2, 3), (4, 5), (5, 6), (0, 7), (7, 8),
             (8, 9), (9, 10), (8, 11), (11, 12), (12, 13), (8, 14), (14, 15), (15, 16)]
    A = jnp.eye(num_joints, dtype=jnp.float32)
    for i, j in edges:
        A = A.at[i, j].set(1.0).at[j, i].set(1.0)
    return A[None]                                         # (1, N, N)


def init_params(key, nfeat, nhid, n_embedding, num_joints):
    ks = jax.random.split(key, 16)
    params = {"adj": build_adjacency(num_joints)}
    # gc1 + bn1
    params["gc1_w"], params["gc1_b"] = init_gconv(ks[0], nfeat, nhid[0])
    params["bn1_scale"], params["bn1_shift"] = bn_params(num_joints, nhid[0])
    # residual blocks 2..4
    dims = [(nhid[0], nhid[1]), (nhid[1], nhid[2]), (nhid[2], nhid[3])]
    for bi, (cin, cout) in enumerate(dims):
        kk = jax.random.split(ks[1 + bi], 3)
        blk = {}
        blk["w1"], blk["b1"] = init_gconv(kk[0], cin, cout)
        blk["bn1_scale"], blk["bn1_shift"] = bn_params(num_joints, cout)
        blk["w2"], blk["b2"] = init_gconv(kk[1], cout, cout)
        blk["bn2_scale"], blk["bn2_shift"] = bn_params(num_joints, cout)
        if cin != cout:                                    # residual_flag == 'diff'
            blk["res_w"], blk["res_b"] = init_gconv(kk[2], cin, cout)
            blk["res_bn_scale"], blk["res_bn_shift"] = bn_params(num_joints, cout)
        params[f"block{bi + 2}"] = blk
    # gc4 (-> n_embedding), no BN
    params["gc4_w"], params["gc4_b"] = init_gconv(ks[10], nhid[3], n_embedding)
    return params


# ----------------------------------------------------------------------------
# Pure-JAX reference (for a correctness check against the fused kernel)
# ----------------------------------------------------------------------------
def reference_forward(x, params):
    A = normalize_undigraph(params["adj"])

    def gconv(h, w, b):
        return jnp.einsum("nm,bmc->bnc", A, h @ w) + b

    def bn(z, scale, shift):
        return z * scale + shift

    h = jax.nn.relu(bn(gconv(x, params["gc1_w"], params["gc1_b"]),
                       params["bn1_scale"], params["bn1_shift"]))
    for name in ("block2", "block3", "block4"):
        p = params[name]
        if "res_w" in p:
            residual = bn(gconv(h, p["res_w"], p["res_b"]),
                          p["res_bn_scale"], p["res_bn_shift"])
        else:
            residual = h
        t = jax.nn.relu(bn(gconv(h, p["w1"], p["b1"]),
                           p["bn1_scale"], p["bn1_shift"]))
        h = jax.nn.relu(bn(gconv(t, p["w2"], p["b2"]),
                           p["bn2_scale"], p["bn2_shift"])) + residual
    return gconv(h, params["gc4_w"], params["gc4_b"])


# ----------------------------------------------------------------------------
if __name__ == "__main__":
    key = jax.random.PRNGKey(0)
    kp, kx = jax.random.split(key)

    B = 2
    nfeat = 4
    nhid = [16, 32, 32, 32]     # block2 exercises the 'diff' residual path
    n_embedding = 16
    num_joints = 17
    # num_groups = 1 (see TODO above), dropout = 0 (eval), pretrain = False

    params = init_params(kp, nfeat, nhid, n_embedding, num_joints)
    x = jax.random.normal(kx, (B, num_joints, nfeat), jnp.float32)

    # Hoisted, one-time: adjacency normalization + BN/bias folding + batch kron.
    fused = prepare_fused_params(params, batch_tile=B)
    fwd = jax.jit(lambda xb: spatial_pose_graph_net(xb, fused))

    out = jax.block_until_ready(fwd(x))

    assert out.shape == (B, num_joints, n_embedding), out.shape
    assert bool(jnp.all(jnp.isfinite(out)))

    ref = reference_forward(x, params)
    assert bool(jnp.allclose(out, ref, rtol=5e-2, atol=5e-2)), \
        float(jnp.max(jnp.abs(out - ref)))

    print("KERNEL_OK")
</pallas_src>

<mosaic_0001>
module attributes {stable_mosaic.version = 11 : i64} {
  func.func @_fused_forward_kernel(%arg0: i32, %arg1: memref<34x4xf32, #tpu.memory_space<vmem>>, %arg2: memref<34x34xf32, #tpu.memory_space<vmem>>, %arg3: memref<4x16xf32, #tpu.memory_space<vmem>>, %arg4: memref<34x16xf32, #tpu.memory_space<vmem>>, %arg5: memref<34x16xf32, #tpu.memory_space<vmem>>, %arg6: memref<16x32xf32, #tpu.memory_space<vmem>>, %arg7: memref<34x32xf32, #tpu.memory_space<vmem>>, %arg8: memref<34x32xf32, #tpu.memory_space<vmem>>, %arg9: memref<16x32xf32, #tpu.memory_space<vmem>>, %arg10: memref<34x32xf32, #tpu.memory_space<vmem>>, %arg11: memref<34x32xf32, #tpu.memory_space<vmem>>, %arg12: memref<32x32xf32, #tpu.memory_space<vmem>>, %arg13: memref<34x32xf32, #tpu.memory_space<vmem>>, %arg14: memref<34x32xf32, #tpu.memory_space<vmem>>, %arg15: memref<32x32xf32, #tpu.memory_space<vmem>>, %arg16: memref<34x32xf32, #tpu.memory_space<vmem>>, %arg17: memref<34x32xf32, #tpu.memory_space<vmem>>, %arg18: memref<32x32xf32, #tpu.memory_space<vmem>>, %arg19: memref<34x32xf32, #tpu.memory_space<vmem>>, %arg20: memref<34x32xf32, #tpu.memory_space<vmem>>, %arg21: memref<32x32xf32, #tpu.memory_space<vmem>>, %arg22: memref<34x32xf32, #tpu.memory_space<vmem>>, %arg23: memref<34x32xf32, #tpu.memory_space<vmem>>, %arg24: memref<32x32xf32, #tpu.memory_space<vmem>>, %arg25: memref<34x32xf32, #tpu.memory_space<vmem>>, %arg26: memref<34x32xf32, #tpu.memory_space<vmem>>, %arg27: memref<32x16xf32, #tpu.memory_space<vmem>>, %arg28: memref<1x16xf32, #tpu.memory_space<vmem>>, %arg29: memref<34x16xf32, #tpu.memory_space<vmem>>) attributes {dimension_semantics = [#tpu.dimension_semantics<parallel>], iteration_bounds = array<i64: 1>, scalar_prefetch = 0 : i64, scratch_operands = 0 : i64, tpu.core_type = #tpu.core_type<tc>, window_params = [{transform_indices = @transform_0, window_bounds = array<i64: 34, 4>}, {pipeline_mode = #tpu.pipeline_mode<synchronous>, transform_indices = @transform_1, window_bounds = array<i64: 34, 34>}, {pipeline_mode = #tpu.pipeline_mode<synchronous>, transform_indices = @transform_2, window_bounds = array<i64: 4, 16>}, {pipeline_mode = #tpu.pipeline_mode<synchronous>, transform_indices = @transform_3, window_bounds = array<i64: 34, 16>}, {pipeline_mode = #tpu.pipeline_mode<synchronous>, transform_indices = @transform_4, window_bounds = array<i64: 34, 16>}, {pipeline_mode = #tpu.pipeline_mode<synchronous>, transform_indices = @transform_5, window_bounds = array<i64: 16, 32>}, {pipeline_mode = #tpu.pipeline_mode<synchronous>, transform_indices = @transform_6, window_bounds = array<i64: 34, 32>}, {pipeline_mode = #tpu.pipeline_mode<synchronous>, transform_indices = @transform_7, window_bounds = array<i64: 34, 32>}, {pipeline_mode = #tpu.pipeline_mode<synchronous>, transform_indices = @transform_8, window_bounds = array<i64: 16, 32>}, {pipeline_mode = #tpu.pipeline_mode<synchronous>, transform_indices = @transform_9, window_bounds = array<i64: 34, 32>}, {pipeline_mode = #tpu.pipeline_mode<synchronous>, transform_indices = @transform_10, window_bounds = array<i64: 34, 32>}, {pipeline_mode = #tpu.pipeline_mode<synchronous>, transform_indices = @transform_11, window_bounds = array<i64: 32, 32>}, {pipeline_mode = #tpu.pipeline_mode<synchronous>, transform_indices = @transform_12, window_bounds = array<i64: 34, 32>}, {pipeline_mode = #tpu.pipeline_mode<synchronous>, transform_indices = @transform_13, window_bounds = array<i64: 34, 32>}, {pipeline_mode = #tpu.pipeline_mode<synchronous>, transform_indices = @transform_14, window_bounds = array<i64: 32, 32>}, {pipeline_mode = #tpu.pipeline_mode<synchronous>, transform_indices = @transform_15, window_bounds = array<i64: 34, 32>}, {pipeline_mode = #tpu.pipeline_mode<synchronous>, transform_indices = @transform_16, window_bounds = array<i64: 34, 32>}, {pipeline_mode = #tpu.pipeline_mode<synchronous>, transform_indices = @transform_17, window_bounds = array<i64: 32, 32>}, {pipeline_mode = #tpu.pipeline_mode<synchronous>, transform_indices = @transform_18, window_bounds = array<i64: 34, 32>}, {pipeline_mode = #tpu.pipeline_mode<synchronous>, transform_indices = @transform_19, window_bounds = array<i64: 34, 32>}, {pipeline_mode = #tpu.pipeline_mode<synchronous>, transform_indices = @transform_20, window_bounds = array<i64: 32, 32>}, {pipeline_mode = #tpu.pipeline_mode<synchronous>, transform_indices = @transform_21, window_bounds = array<i64: 34, 32>}, {pipeline_mode = #tpu.pipeline_mode<synchronous>, transform_indices = @transform_22, window_bounds = array<i64: 34, 32>}, {pipeline_mode = #tpu.pipeline_mode<synchronous>, transform_indices = @transform_23, window_bounds = array<i64: 32, 32>}, {pipeline_mode = #tpu.pipeline_mode<synchronous>, transform_indices = @transform_24, window_bounds = array<i64: 34, 32>}, {pipeline_mode = #tpu.pipeline_mode<synchronous>, transform_indices = @transform_25, window_bounds = array<i64: 34, 32>}, {pipeline_mode = #tpu.pipeline_mode<synchronous>, transform_indices = @transform_26, window_bounds = array<i64: 32, 16>}, {pipeline_mode = #tpu.pipeline_mode<synchronous>, transform_indices = @transform_27, window_bounds = array<i64: 1, 16>}, {transform_indices = @transform_28, window_bounds = array<i64: 34, 16>}]} {
    %c0 = arith.constant 0 : index
    %c0_0 = arith.constant 0 : index
    %0 = vector.load %arg2[%c0, %c0_0] : memref<34x34xf32, #tpu.memory_space<vmem>>, vector<34x34xf32>
    %c0_1 = arith.constant 0 : index
    %c0_2 = arith.constant 0 : index
    %1 = vector.load %arg1[%c0_1, %c0_2] : memref<34x4xf32, #tpu.memory_space<vmem>>, vector<34x4xf32>
    %c0_3 = arith.constant 0 : index
    %c0_4 = arith.constant 0 : index
    %2 = vector.load %arg3[%c0_3, %c0_4] : memref<4x16xf32, #tpu.memory_space<vmem>>, vector<4x16xf32>
    %cst = arith.constant dense<0.000000e+00> : vector<34x16xf32>
    %3 = tpu.matmul %1, %2, %cst {dimension_numbers = #tpu.dot_dimension_numbers<[1], [0], [0], [1], [0, 0, 1, 1], [], []>} : vector<34x4xf32>, vector<4x16xf32>, vector<34x16xf32> -> vector<34x16xf32>
    %cst_5 = arith.constant dense<0.000000e+00> : vector<34x16xf32>
    %4 = tpu.matmul %0, %3, %cst_5 {dimension_numbers = #tpu.dot_dimension_numbers<[1], [0], [0], [1], [0, 0, 1, 1], [], []>} : vector<34x34xf32>, vector<34x16xf32>, vector<34x16xf32> -> vector<34x16xf32>
    %c0_6 = arith.constant 0 : index
    %c0_7 = arith.constant 0 : index
    %5 = vector.load %arg4[%c0_6, %c0_7] : memref<34x16xf32, #tpu.memory_space<vmem>>, vector<34x16xf32>
    %6 = arith.mulf %4, %5 : vector<34x16xf32>
    %c0_8 = arith.constant 0 : index
    %c0_9 = arith.constant 0 : index
    %7 = vector.load %arg5[%c0_8, %c0_9] : memref<34x16xf32, #tpu.memory_space<vmem>>, vector<34x16xf32>
    %8 = arith.addf %6, %7 : vector<34x16xf32>
    %cst_10 = arith.constant 0.000000e+00 : f32
    %9 = vector.broadcast %cst_10 : f32 to vector<34x16xf32>
    %10 = arith.maximumf %8, %9 : vector<34x16xf32>
    %c0_11 = arith.constant 0 : index
    %c0_12 = arith.constant 0 : index
    %11 = vector.load %arg6[%c0_11, %c0_12] : memref<16x32xf32, #tpu.memory_space<vmem>>, vector<16x32xf32>
    %cst_13 = arith.constant dense<0.000000e+00> : vector<34x32xf32>
    %12 = tpu.matmul %10, %11, %cst_13 {dimension_numbers = #tpu.dot_dimension_numbers<[1], [0], [0], [1], [0, 0, 1, 1], [], []>} : vector<34x16xf32>, vector<16x32xf32>, vector<34x32xf32> -> vector<34x32xf32>
    %cst_14 = arith.constant dense<0.000000e+00> : vector<34x32xf32>
    %13 = tpu.matmul %0, %12, %cst_14 {dimension_numbers = #tpu.dot_dimension_numbers<[1], [0], [0], [1], [0, 0, 1, 1], [], []>} : vector<34x34xf32>, vector<34x32xf32>, vector<34x32xf32> -> vector<34x32xf32>
    %c0_15 = arith.constant 0 : index
    %c0_16 = arith.constant 0 : index
    %14 = vector.load %arg7[%c0_15, %c0_16] : memref<34x32xf32, #tpu.memory_space<vmem>>, vector<34x32xf32>
    %15 = arith.mulf %13, %14 : vector<34x32xf32>
    %c0_17 = arith.constant 0 : index
    %c0_18 = arith.constant 0 : index
    %16 = vector.load %arg8[%c0_17, %c0_18] : memref<34x32xf32, #tpu.memory_space<vmem>>, vector<34x32xf32>
    %17 = arith.addf %15, %16 : vector<34x32xf32>
    %c0_19 = arith.constant 0 : index
    %c0_20 = arith.constant 0 : index
    %18 = vector.load %arg9[%c0_19, %c0_20] : memref<16x32xf32, #tpu.memory_space<vmem>>, vector<16x32xf32>
    %cst_21 = arith.constant dense<0.000000e+00> : vector<34x32xf32>
    %19 = tpu.matmul %10, %18, %cst_21 {dimension_numbers = #tpu.dot_dimension_numbers<[1], [0], [0], [1], [0, 0, 1, 1], [], []>} : vector<34x16xf32>, vector<16x32xf32>, vector<34x32xf32> -> vector<34x32xf32>
    %cst_22 = arith.constant dense<0.000000e+00> : vector<34x32xf32>
    %20 = tpu.matmul %0, %19, %cst_22 {dimension_numbers = #tpu.dot_dimension_numbers<[1], [0], [0], [1], [0, 0, 1, 1], [], []>} : vector<34x34xf32>, vector<34x32xf32>, vector<34x32xf32> -> vector<34x32xf32>
    %c0_23 = arith.constant 0 : index
    %c0_24 = arith.constant 0 : index
    %21 = vector.load %arg10[%c0_23, %c0_24] : memref<34x32xf32, #tpu.memory_space<vmem>>, vector<34x32xf32>
    %22 = arith.mulf %20, %21 : vector<34x32xf32>
    %c0_25 = arith.constant 0 : index
    %c0_26 = arith.constant 0 : index
    %23 = vector.load %arg11[%c0_25, %c0_26] : memref<34x32xf32, #tpu.memory_space<vmem>>, vector<34x32xf32>
    %24 = arith.addf %22, %23 : vector<34x32xf32>
    %cst_27 = arith.constant 0.000000e+00 : f32
    %25 = vector.broadcast %cst_27 : f32 to vector<34x32xf32>
    %26 = arith.maximumf %24, %25 : vector<34x32xf32>
    %c0_28 = arith.constant 0 : index
    %c0_29 = arith.constant 0 : index
    %27 = vector.load %arg12[%c0_28, %c0_29] : memref<32x32xf32, #tpu.memory_space<vmem>>, vector<32x32xf32>
    %cst_30 = arith.constant dense<0.000000e+00> : vector<34x32xf32>
    %28 = tpu.matmul %26, %27, %cst_30 {dimension_numbers = #tpu.dot_dimension_numbers<[1], [0], [0], [1], [0, 0, 1, 1], [], []>} : vector<34x32xf32>, vector<32x32xf32>, vector<34x32xf32> -> vector<34x32xf32>
    %cst_31 = arith.constant dense<0.000000e+00> : vector<34x32xf32>
    %29 = tpu.matmul %0, %28, %cst_31 {dimension_numbers = #tpu.dot_dimension_numbers<[1], [0], [0], [1], [0, 0, 1, 1], [], []>} : vector<34x34xf32>, vector<34x32xf32>, vector<34x32xf32> -> vector<34x32xf32>
    %c0_32 = arith.constant 0 : index
    %c0_33 = arith.constant 0 : index
    %30 = vector.load %arg13[%c0_32, %c0_33] : memref<34x32xf32, #tpu.memory_space<vmem>>, vector<34x32xf32>
    %31 = arith.mulf %29, %30 : vector<34x32xf32>
    %c0_34 = arith.constant 0 : index
    %c0_35 = arith.constant 0 : index
    %32 = vector.load %arg14[%c0_34, %c0_35] : memref<34x32xf32, #tpu.memory_space<vmem>>, vector<34x32xf32>
    %33 = arith.addf %31, %32 : vector<34x32xf32>
    %cst_36 = arith.constant 0.000000e+00 : f32
    %34 = vector.broadcast %cst_36 : f32 to vector<34x32xf32>
    %35 = arith.maximumf %33, %34 : vector<34x32xf32>
    %36 = arith.addf %35, %17 : vector<34x32xf32>
    %c0_37 = arith.constant 0 : index
    %c0_38 = arith.constant 0 : index
    %37 = vector.load %arg15[%c0_37, %c0_38] : memref<32x32xf32, #tpu.memory_space<vmem>>, vector<32x32xf32>
    %cst_39 = arith.constant dense<0.000000e+00> : vector<34x32xf32>
    %38 = tpu.matmul %36, %37, %cst_39 {dimension_numbers = #tpu.dot_dimension_numbers<[1], [0], [0], [1], [0, 0, 1, 1], [], []>} : vector<34x32xf32>, vector<32x32xf32>, vector<34x32xf32> -> vector<34x32xf32>
    %cst_40 = arith.constant dense<0.000000e+00> : vector<34x32xf32>
    %39 = tpu.matmul %0, %38, %cst_40 {dimension_numbers = #tpu.dot_dimension_numbers<[1], [0], [0], [1], [0, 0, 1, 1], [], []>} : vector<34x34xf32>, vector<34x32xf32>, vector<34x32xf32> -> vector<34x32xf32>
    %c0_41 = arith.constant 0 : index
    %c0_42 = arith.constant 0 : index
    %40 = vector.load %arg16[%c0_41, %c0_42] : memref<34x32xf32, #tpu.memory_space<vmem>>, vector<34x32xf32>
    %41 = arith.mulf %39, %40 : vector<34x32xf32>
    %c0_43 = arith.constant 0 : index
    %c0_44 = arith.constant 0 : index
    %42 = vector.load %arg17[%c0_43, %c0_44] : memref<34x32xf32, #tpu.memory_space<vmem>>, vector<34x32xf32>
    %43 = arith.addf %41, %42 : vector<34x32xf32>
    %cst_45 = arith.constant 0.000000e+00 : f32
    %44 = vector.broadcast %cst_45 : f32 to vector<34x32xf32>
    %45 = arith.maximumf %43, %44 : vector<34x32xf32>
    %c0_46 = arith.constant 0 : index
    %c0_47 = arith.constant 0 : index
    %46 = vector.load %arg18[%c0_46, %c0_47] : memref<32x32xf32, #tpu.memory_space<vmem>>, vector<32x32xf32>
    %cst_48 = arith.constant dense<0.000000e+00> : vector<34x32xf32>
    %47 = tpu.matmul %45, %46, %cst_48 {dimension_numbers = #tpu.dot_dimension_numbers<[1], [0], [0], [1], [0, 0, 1, 1], [], []>} : vector<34x32xf32>, vector<32x32xf32>, vector<34x32xf32> -> vector<34x32xf32>
    %cst_49 = arith.constant dense<0.000000e+00> : vector<34x32xf32>
    %48 = tpu.matmul %0, %47, %cst_49 {dimension_numbers = #tpu.dot_dimension_numbers<[1], [0], [0], [1], [0, 0, 1, 1], [], []>} : vector<34x34xf32>, vector<34x32xf32>, vector<34x32xf32> -> vector<34x32xf32>
    %c0_50 = arith.constant 0 : index
    %c0_51 = arith.constant 0 : index
    %49 = vector.load %arg19[%c0_50, %c0_51] : memref<34x32xf32, #tpu.memory_space<vmem>>, vector<34x32xf32>
    %50 = arith.mulf %48, %49 : vector<34x32xf32>
    %c0_52 = arith.constant 0 : index
    %c0_53 = arith.constant 0 : index
    %51 = vector.load %arg20[%c0_52, %c0_53] : memref<34x32xf32, #tpu.memory_space<vmem>>, vector<34x32xf32>
    %52 = arith.addf %50, %51 : vector<34x32xf32>
    %cst_54 = arith.constant 0.000000e+00 : f32
    %53 = vector.broadcast %cst_54 : f32 to vector<34x32xf32>
    %54 = arith.maximumf %52, %53 : vector<34x32xf32>
    %55 = arith.addf %54, %36 : vector<34x32xf32>
    %c0_55 = arith.constant 0 : index
    %c0_56 = arith.constant 0 : index
    %56 = vector.load %arg21[%c0_55, %c0_56] : memref<32x32xf32, #tpu.memory_space<vmem>>, vector<32x32xf32>
    %cst_57 = arith.constant dense<0.000000e+00> : vector<34x32xf32>
    %57 = tpu.matmul %55, %56, %cst_57 {dimension_numbers = #tpu.dot_dimension_numbers<[1], [0], [0], [1], [0, 0, 1, 1], [], []>} : vector<34x32xf32>, vector<32x32xf32>, vector<34x32xf32> -> vector<34x32xf32>
    %cst_58 = arith.constant dense<0.000000e+00> : vector<34x32xf32>
    %58 = tpu.matmul %0, %57, %cst_58 {dimension_numbers = #tpu.dot_dimension_numbers<[1], [0], [0], [1], [0, 0, 1, 1], [], []>} : vector<34x34xf32>, vector<34x32xf32>, vector<34x32xf32> -> vector<34x32xf32>
    %c0_59 = arith.constant 0 : index
    %c0_60 = arith.constant 0 : index
    %59 = vector.load %arg22[%c0_59, %c0_60] : memref<34x32xf32, #tpu.memory_space<vmem>>, vector<34x32xf32>
    %60 = arith.mulf %58, %59 : vector<34x32xf32>
    %c0_61 = arith.constant 0 : index
    %c0_62 = arith.constant 0 : index
    %61 = vector.load %arg23[%c0_61, %c0_62] : memref<34x32xf32, #tpu.memory_space<vmem>>, vector<34x32xf32>
    %62 = arith.addf %60, %61 : vector<34x32xf32>
    %cst_63 = arith.constant 0.000000e+00 : f32
    %63 = vector.broadcast %cst_63 : f32 to vector<34x32xf32>
    %64 = arith.maximumf %62, %63 : vector<34x32xf32>
    %c0_64 = arith.constant 0 : index
    %c0_65 = arith.constant 0 : index
    %65 = vector.load %arg24[%c0_64, %c0_65] : memref<32x32xf32, #tpu.memory_space<vmem>>, vector<32x32xf32>
    %cst_66 = arith.constant dense<0.000000e+00> : vector<34x32xf32>
    %66 = tpu.matmul %64, %65, %cst_66 {dimension_numbers = #tpu.dot_dimension_numbers<[1], [0], [0], [1], [0, 0, 1, 1], [], []>} : vector<34x32xf32>, vector<32x32xf32>, vector<34x32xf32> -> vector<34x32xf32>
    %cst_67 = arith.constant dense<0.000000e+00> : vector<34x32xf32>
    %67 = tpu.matmul %0, %66, %cst_67 {dimension_numbers = #tpu.dot_dimension_numbers<[1], [0], [0], [1], [0, 0, 1, 1], [], []>} : vector<34x34xf32>, vector<34x32xf32>, vector<34x32xf32> -> vector<34x32xf32>
    %c0_68 = arith.constant 0 : index
    %c0_69 = arith.constant 0 : index
    %68 = vector.load %arg25[%c0_68, %c0_69] : memref<34x32xf32, #tpu.memory_space<vmem>>, vector<34x32xf32>
    %69 = arith.mulf %67, %68 : vector<34x32xf32>
    %c0_70 = arith.constant 0 : index
    %c0_71 = arith.constant 0 : index
    %70 = vector.load %arg26[%c0_70, %c0_71] : memref<34x32xf32, #tpu.memory_space<vmem>>, vector<34x32xf32>
    %71 = arith.addf %69, %70 : vector<34x32xf32>
    %cst_72 = arith.constant 0.000000e+00 : f32
    %72 = vector.broadcast %cst_72 : f32 to vector<34x32xf32>
    %73 = arith.maximumf %71, %72 : vector<34x32xf32>
    %74 = arith.addf %73, %55 : vector<34x32xf32>
    %c0_73 = arith.constant 0 : index
    %c0_74 = arith.constant 0 : index
    %75 = vector.load %arg27[%c0_73, %c0_74] : memref<32x16xf32, #tpu.memory_space<vmem>>, vector<32x16xf32>
    %cst_75 = arith.constant dense<0.000000e+00> : vector<34x16xf32>
    %76 = tpu.matmul %74, %75, %cst_75 {dimension_numbers = #tpu.dot_dimension_numbers<[1], [0], [0], [1], [0, 0, 1, 1], [], []>} : vector<34x32xf32>, vector<32x16xf32>, vector<34x16xf32> -> vector<34x16xf32>
    %cst_76 = arith.constant dense<0.000000e+00> : vector<34x16xf32>
    %77 = tpu.matmul %0, %76, %cst_76 {dimension_numbers = #tpu.dot_dimension_numbers<[1], [0], [0], [1], [0, 0, 1, 1], [], []>} : vector<34x34xf32>, vector<34x16xf32>, vector<34x16xf32> -> vector<34x16xf32>
    %c0_77 = arith.constant 0 : index
    %c0_78 = arith.constant 0 : index
    %78 = vector.load %arg28[%c0_77, %c0_78] : memref<1x16xf32, #tpu.memory_space<vmem>>, vector<1x16xf32>
    %79 = vector.broadcast %78 : vector<1x16xf32> to vector<34x16xf32>
    %80 = arith.addf %77, %79 : vector<34x16xf32>
    %c0_79 = arith.constant 0 : index
    %c0_80 = arith.constant 0 : index
    %81 = vector.load %arg29[%c0_79, %c0_80] : memref<34x16xf32, #tpu.memory_space<vmem>>, vector<34x16xf32>
    tpu.vector_store %arg29[%c0_79, %c0_80], %80 {strides = array<i32>} : memref<34x16xf32, #tpu.memory_space<vmem>>, vector<34x16xf32>,
    return
  }
  func.func @transform_0(%arg0: i32) -> (i32, i32) {
    %c0_i32 = arith.constant 0 : i32
    %c0_i32_0 = arith.constant 0 : i32
    return %arg0, %c0_i32 : i32, i32
  }
  func.func @transform_1(%arg0: i32) -> (i32, i32) {
    %c0_i32 = arith.constant 0 : i32
    %c0_i32_0 = arith.constant 0 : i32
    %c0_i32_1 = arith.constant 0 : i32
    return %c0_i32, %c0_i32_0 : i32, i32
  }
  func.func @transform_2(%arg0: i32) -> (i32, i32) {
    %c0_i32 = arith.constant 0 : i32
    %c0_i32_0 = arith.constant 0 : i32
    %c0_i32_1 = arith.constant 0 : i32
    return %c0_i32, %c0_i32_0 : i32, i32
  }
  func.func @transform_3(%arg0: i32) -> (i32, i32) {
    %c0_i32 = arith.constant 0 : i32
    %c0_i32_0 = arith.constant 0 : i32
    %c0_i32_1 = arith.constant 0 : i32
    return %c0_i32, %c0_i32_0 : i32, i32
  }
  func.func @transform_4(%arg0: i32) -> (i32, i32) {
    %c0_i32 = arith.constant 0 : i32
    %c0_i32_0 = arith.constant 0 : i32
    %c0_i32_1 = arith.constant 0 : i32
    return %c0_i32, %c0_i32_0 : i32, i32
  }
  func.func @transform_5(%arg0: i32) -> (i32, i32) {
    %c0_i32 = arith.constant 0 : i32
    %c0_i32_0 = arith.constant 0 : i32
    %c0_i32_1 = arith.constant 0 : i32
    return %c0_i32, %c0_i32_0 : i32, i32
  }
  func.func @transform_6(%arg0: i32) -> (i32, i32) {
    %c0_i32 = arith.constant 0 : i32
    %c0_i32_0 = arith.constant 0 : i32
    %c0_i32_1 = arith.constant 0 : i32
    return %c0_i32, %c0_i32_0 : i32, i32
  }
  func.func @transform_7(%arg0: i32) -> (i32, i32) {
    %c0_i32 = arith.constant 0 : i32
    %c0_i32_0 = arith.constant 0 : i32
    %c0_i32_1 = arith.constant 0 : i32
    return %c0_i32, %c0_i32_0 : i32, i32
  }
  func.func @transform_8(%arg0: i32) -> (i32, i32) {
    %c0_i32 = arith.constant 0 : i32
    %c0_i32_0 = arith.constant 0 : i32
    %c0_i32_1 = arith.constant 0 : i32
    return %c0_i32, %c0_i32_0 : i32, i32
  }
  func.func @transform_9(%arg0: i32) -> (i32, i32) {
    %c0_i32 = arith.constant 0 : i32
    %c0_i32_0 = arith.constant 0 : i32
    %c0_i32_1 = arith.constant 0 : i32
    return %c0_i32, %c0_i32_0 : i32, i32
  }
  func.func @transform_10(%arg0: i32) -> (i32, i32) {
    %c0_i32 = arith.constant 0 : i32
    %c0_i32_0 = arith.constant 0 : i32
    %c0_i32_1 = arith.constant 0 : i32
    return %c0_i32, %c0_i32_0 : i32, i32
  }
  func.func @transform_11(%arg0: i32) -> (i32, i32) {
    %c0_i32 = arith.constant 0 : i32
    %c0_i32_0 = arith.constant 0 : i32
    %c0_i32_1 = arith.constant 0 : i32
    return %c0_i32, %c0_i32_0 : i32, i32
  }
  func.func @transform_12(%arg0: i32) -> (i32, i32) {
    %c0_i32 = arith.constant 0 : i32
    %c0_i32_0 = arith.constant 0 : i32
    %c0_i32_1 = arith.constant 0 : i32
    return %c0_i32, %c0_i32_0 : i32, i32
  }
  func.func @transform_13(%arg0: i32) -> (i32, i32) {
    %c0_i32 = arith.constant 0 : i32
    %c0_i32_0 = arith.constant 0 : i32
    %c0_i32_1 = arith.constant 0 : i32
    return %c0_i32, %c0_i32_0 : i32, i32
  }
  func.func @transform_14(%arg0: i32) -> (i32, i32) {
    %c0_i32 = arith.constant 0 : i32
    %c0_i32_0 = arith.constant 0 : i32
    %c0_i32_1 = arith.constant 0 : i32
    return %c0_i32, %c0_i32_0 : i32, i32
  }
  func.func @transform_15(%arg0: i32) -> (i32, i32) {
    %c0_i32 = arith.constant 0 : i32
    %c0_i32_0 = arith.constant 0 : i32
    %c0_i32_1 = arith.constant 0 : i32
    return %c0_i32, %c0_i32_0 : i32, i32
  }
  func.func @transform_16(%arg0: i32) -> (i32, i32) {
    %c0_i32 = arith.constant 0 : i32
    %c0_i32_0 = arith.constant 0 : i32
    %c0_i32_1 = arith.constant 0 : i32
    return %c0_i32, %c0_i32_0 : i32, i32
  }
  func.func @transform_17(%arg0: i32) -> (i32, i32) {
    %c0_i32 = arith.constant 0 : i32
    %c0_i32_0 = arith.constant 0 : i32
    %c0_i32_1 = arith.constant 0 : i32
    return %c0_i32, %c0_i32_0 : i32, i32
  }
  func.func @transform_18(%arg0: i32) -> (i32, i32) {
    %c0_i32 = arith.constant 0 : i32
    %c0_i32_0 = arith.constant 0 : i32
    %c0_i32_1 = arith.constant 0 : i32
    return %c0_i32, %c0_i32_0 : i32, i32
  }
  func.func @transform_19(%arg0: i32) -> (i32, i32) {
    %c0_i32 = arith.constant 0 : i32
    %c0_i32_0 = arith.constant 0 : i32
    %c0_i32_1 = arith.constant 0 : i32
    return %c0_i32, %c0_i32_0 : i32, i32
  }
  func.func @transform_20(%arg0: i32) -> (i32, i32) {
    %c0_i32 = arith.constant 0 : i32
    %c0_i32_0 = arith.constant 0 : i32
    %c0_i32_1 = arith.constant 0 : i32
    return %c0_i32, %c0_i32_0 : i32, i32
  }
  func.func @transform_21(%arg0: i32) -> (i32, i32) {
    %c0_i32 = arith.constant 0 : i32
    %c0_i32_0 = arith.constant 0 : i32
    %c0_i32_1 = arith.constant 0 : i32
    return %c0_i32, %c0_i32_0 : i32, i32
  }
  func.func @transform_22(%arg0: i32) -> (i32, i32) {
    %c0_i32 = arith.constant 0 : i32
    %c0_i32_0 = arith.constant 0 : i32
    %c0_i32_1 = arith.constant 0 : i32
    return %c0_i32, %c0_i32_0 : i32, i32
  }
  func.func @transform_23(%arg0: i32) -> (i32, i32) {
    %c0_i32 = arith.constant 0 : i32
    %c0_i32_0 = arith.constant 0 : i32
    %c0_i32_1 = arith.constant 0 : i32
    return %c0_i32, %c0_i32_0 : i32, i32
  }
  func.func @transform_24(%arg0: i32) -> (i32, i32) {
    %c0_i32 = arith.constant 0 : i32
    %c0_i32_0 = arith.constant 0 : i32
    %c0_i32_1 = arith.constant 0 : i32
    return %c0_i32, %c0_i32_0 : i32, i32
  }
  func.func @transform_25(%arg0: i32) -> (i32, i32) {
    %c0_i32 = arith.constant 0 : i32
    %c0_i32_0 = arith.constant 0 : i32
    %c0_i32_1 = arith.constant 0 : i32
    return %c0_i32, %c0_i32_0 : i32, i32
  }
  func.func @transform_26(%arg0: i32) -> (i32, i32) {
    %c0_i32 = arith.constant 0 : i32
    %c0_i32_0 = arith.constant 0 : i32
    %c0_i32_1 = arith.constant 0 : i32
    return %c0_i32, %c0_i32_0 : i32, i32
  }
  func.func @transform_27(%arg0: i32) -> (i32, i32) {
    %c0_i32 = arith.constant 0 : i32
    %c0_i32_0 = arith.constant 0 : i32
    %c0_i32_1 = arith.constant 0 : i32
    return %c0_i32, %c0_i32_0 : i32, i32
  }
  func.func @transform_28(%arg0: i32) -> (i32, i32) {
    %c0_i32 = arith.constant 0 : i32
    %c0_i32_0 = arith.constant 0 : i32
    return %arg0, %c0_i32 : i32, i32
  }
}

</mosaic_0001>

<llo_original>
// kernel: _lambda_.1
$region0: #{_lambda_.1}
  #allocation0 [shape = 'u32[]', space=smem, size = 0x4, offset = 0x4, fixed_abs, tag = 'smem constant byte address 0x4 - core index']
  #allocation1 [shape = 'u32[144,128]{1,0:T(1,128)}', space=vmem, size = 0x12000, scoped, tag = 'internal scratch']
  %s0 = inlined_call_operand.vmem [shape: f32[34,4], index: 0, kind: input, shape index: {}]
  %s1 = inlined_call_operand.hbm [shape: f32[34,34], index: 1, kind: input, shape index: {}]
  %s2 = inlined_call_operand.hbm [shape: f32[4,16], index: 2, kind: input, shape index: {}]
  %s3 = inlined_call_operand.vmem [shape: f32[34,16], index: 3, kind: input, shape index: {}]
  %s4 = inlined_call_operand.hbm [shape: f32[34,16], index: 4, kind: input, shape index: {}]
  %s5 = inlined_call_operand.hbm [shape: f32[16,32], index: 5, kind: input, shape index: {}]
  %s6 = inlined_call_operand.vmem [shape: f32[34,32], index: 6, kind: input, shape index: {}, may-alias: {6,9,12,15,18,21,24}]
  %s7 = inlined_call_operand.hbm [shape: f32[34,32], index: 7, kind: input, shape index: {}]
  %s8 = inlined_call_operand.hbm [shape: f32[16,32], index: 8, kind: input, shape index: {}]
  %s9 = inlined_call_operand.vmem [shape: f32[34,32], index: 9, kind: input, shape index: {}, may-alias: {6,9,12,15,18,21,24}]
  %s10 = inlined_call_operand.hbm [shape: f32[34,32], index: 10, kind: input, shape index: {}]
  %s11 = inlined_call_operand.hbm [shape: f32[32,32], index: 11, kind: input, shape index: {}]
  %s12 = inlined_call_operand.vmem [shape: f32[34,32], index: 12, kind: input, shape index: {}, may-alias: {6,9,12,15,18,21,24}]
  %s13 = inlined_call_operand.hbm [shape: f32[34,32], index: 13, kind: input, shape index: {}]
  %s14 = inlined_call_operand.hbm [shape: f32[32,32], index: 14, kind: input, shape index: {}]
  %s15 = inlined_call_operand.vmem [shape: f32[34,32], index: 15, kind: input, shape index: {}, may-alias: {6,9,12,15,18,21,24}]
  %s16 = inlined_call_operand.vmem [shape: f32[34,32], index: 16, kind: input, shape index: {}]
  %s17 = inlined_call_operand.hbm [shape: f32[32,32], index: 17, kind: input, shape index: {}]
  %s18 = inlined_call_operand.vmem [shape: f32[34,32], index: 18, kind: input, shape index: {}, may-alias: {6,9,12,15,18,21,24}]
  %s19 = inlined_call_operand.vmem [shape: f32[34,32], index: 19, kind: input, shape index: {}]
  %s20 = inlined_call_operand.hbm [shape: f32[32,32], index: 20, kind: input, shape index: {}]
  %s21 = inlined_call_operand.vmem [shape: f32[34,32], index: 21, kind: input, shape index: {}, may-alias: {6,9,12,15,18,21,24}]
  %s22 = inlined_call_operand.vmem [shape: f32[34,32], index: 22, kind: input, shape index: {}]
  %s23 = inlined_call_operand.hbm [shape: f32[32,32], index: 23, kind: input, shape index: {}]
  %s24 = inlined_call_operand.vmem [shape: f32[34,32], index: 24, kind: input, shape index: {}, may-alias: {6,9,12,15,18,21,24}]
  %s25 = inlined_call_operand.vmem [shape: f32[34,32], index: 25, kind: input, shape index: {}]
  %s26 = inlined_call_operand.vmem [shape: f32[32,16], index: 26, kind: input, shape index: {}]
  %s27 = inlined_call_operand.vmem [shape: f32[1,16], index: 27, kind: input, shape index: {}]
  %s28 = inlined_call_operand.vmem [shape: f32[34,16], index: 28, kind: output, shape index: {}]
  %s29 = sld [smem:[#allocation0]]
  $region174: #{_lambda_.1} parent=0
    _
  %s31 = ssub.s32 1, %s29
  %s32 = scalar_select 0, %s31, %s29
  $region1: #{_lambda_.1} parent=0
    #allocation2 [shape = 'u8[20480]{0}', space=vmem, size = 0x5000, scoped, tag = 'input window, operand 1, single buffered']
    #allocation3 [shape = 's32[1]{0}', space=sflag, size = 0x4, scoped, tag = 'scoped memory for _lambda_.1']
    #allocation4 [shape = 'u8[2048]{0}', space=vmem, size = 0x800, scoped, tag = 'input window, operand 2, single buffered']
    #allocation5 [shape = 's32[1]{0}', space=sflag, size = 0x4, scoped, tag = 'scoped memory for _lambda_.1']
    #allocation6 [shape = 'u8[20480]{0}', space=vmem, size = 0x5000, scoped, tag = 'input window, operand 4, single buffered']
    #allocation7 [shape = 'u8[8192]{0}', space=vmem, size = 0x2000, scoped, tag = 'input window, operand 5, single buffered']
    #allocation8 [shape = 's32[1]{0}', space=sflag, size = 0x4, scoped, tag = 'scoped memory for _lambda_.1']
    #allocation9 [shape = 'u8[20480]{0}', space=vmem, size = 0x5000, scoped, tag = 'input window, operand 7, single buffered']
    #allocation10 [shape = 'u8[8192]{0}', space=vmem, size = 0x2000, scoped, tag = 'input window, operand 8, single buffered']
    #allocation11 [shape = 's32[1]{0}', space=sflag, size = 0x4, scoped, tag = 'scoped memory for _lambda_.1']
    #allocation12 [shape = 'u8[20480]{0}', space=vmem, size = 0x5000, scoped, tag = 'input window, operand 10, single buffered']
    #allocation13 [shape = 'u8[16384]{0}', space=vmem, size = 0x4000, scoped, tag = 'input window, operand 11, single buffered']
    #allocation14 [shape = 's32[1]{0}', space=sflag, size = 0x4, scoped, tag = 'scoped memory for _lambda_.1']
    #allocation15 [shape = 'u8[20480]{0}', space=vmem, size = 0x5000, scoped, tag = 'input window, operand 13, single buffered']
    #allocation16 [shape = 'u8[16384]{0}', space=vmem, size = 0x4000, scoped, tag = 'input window, operand 14, single buffered']
    #allocation17 [shape = 's32[1]{0}', space=sflag, size = 0x4, scoped, tag = 'scoped memory for _lambda_.1']
    #allocation18 [shape = 'u8[16384]{0}', space=vmem, size = 0x4000, scoped, tag = 'input window, operand 17, single buffered']
    #allocation19 [shape = 'u8[16384]{0}', space=vmem, size = 0x4000, scoped, tag = 'input window, operand 20, single buffered']
    #allocation20 [shape = 's32[1]{0}', space=sflag, size = 0x4, scoped, tag = 'scoped memory for _lambda_.1']
    #allocation21 [shape = 'u8[16384]{0}', space=vmem, size = 0x4000, scoped, tag = 'input window, operand 23, single buffered']
    %33 = vsyncpa [#allocation3], 0
    %34 = vsyncpa [#allocation5], 0
    %35 = vsyncpa [#allocation8], 0
    %36 = vsyncpa [#allocation11], 0
    %37 = vsyncpa [#allocation14], 0
    %38 = vsyncpa [#allocation17], 0
    %39 = vsyncpa [#allocation20], 0
    // Predicated region
    $region2: #{_lambda_.1} parent=1 // pred_check
      _
    $region3: #{_lambda_.1} parent=1 // pred_check_branch
      %41 = sbr.rel (0) target = $region5
    $region4: #{_lambda_.1} parent=1 // pred_region
      _
    $region5: #{_lambda_.1} parent=1 // pred_fallthru
      _
    // Predicated region
    $region6: #{_lambda_.1} parent=1 // pred_check
      _
    $region7: #{_lambda_.1} parent=1 // pred_check_branch
      %43 = sbr.rel (0) target = $region9
    $region8: #{_lambda_.1} parent=1 // pred_region
      %s45 = ssub.s32 640, 640
      %46 = vsyncadd [#allocation3], %s45
      %s47 = sshll.u32 [#allocation2], 4
      %s48 = int_to_ptr.vmem [resolvable:$true] %s47
      %53 = dma.hbm_to_vmem [thread:$0]  %s1, 640, %s48, [#allocation3], 128, 128, 8
    $region9: #{_lambda_.1} parent=1 // pred_fallthru
      _
    // Predicated region
    $region10: #{_lambda_.1} parent=1 // pred_check
      _
    $region11: #{_lambda_.1} parent=1 // pred_check_branch
      %55 = sbr.rel (0) target = $region13
    $region12: #{_lambda_.1} parent=1 // pred_region
      %s57 = ssub.s32 64, 64
      %58 = vsyncadd [#allocation5], %s57
      %s60 = sshll.u32 [#allocation4], 4
      %s61 = int_to_ptr.vmem [resolvable:$true] %s60
      %63 = dma.hbm_to_vmem [thread:$0]  %s2, 64, %s61, [#allocation5]
    $region13: #{_lambda_.1} parent=1 // pred_fallthru
      _
    // Predicated region
    $region14: #{_lambda_.1} parent=1 // pred_check
      _
    $region15: #{_lambda_.1} parent=1 // pred_check_branch
      %65 = sbr.rel (0) target = $region17
    $region16: #{_lambda_.1} parent=1 // pred_region
      _
    $region17: #{_lambda_.1} parent=1 // pred_fallthru
      _
    // Predicated region
    $region18: #{_lambda_.1} parent=1 // pred_check
      _
    $region19: #{_lambda_.1} parent=1 // pred_check_branch
      %67 = sbr.rel (0) target = $region21
    $region20: #{_lambda_.1} parent=1 // pred_region
      %s69 = ssub.s32 640, 640
      %70 = vsyncadd [#allocation5], %s69
      %s71 = sshll.u32 [#allocation6], 4
      %s72 = int_to_ptr.vmem [resolvable:$true] %s71
      %77 = dma.hbm_to_vmem [thread:$0]  %s4, 640, %s72, [#allocation5], 128, 128, 8
    $region21: #{_lambda_.1} parent=1 // pred_fallthru
      _
    // Predicated region
    $region22: #{_lambda_.1} parent=1 // pred_check
      _
    $region23: #{_lambda_.1} parent=1 // pred_check_branch
      %79 = sbr.rel (0) target = $region25
    $region24: #{_lambda_.1} parent=1 // pred_region
      %s81 = ssub.s32 256, 256
      %82 = vsyncadd [#allocation8], %s81
      %s83 = sshll.u32 [#allocation7], 4
      %s84 = int_to_ptr.vmem [resolvable:$true] %s83
      %89 = dma.hbm_to_vmem [thread:$0]  %s5, 256, %s84, [#allocation8], 128, 128, 8
    $region25: #{_lambda_.1} parent=1 // pred_fallthru
      _
    // Predicated region
    $region26: #{_lambda_.1} parent=1 // pred_check
      _
    $region27: #{_lambda_.1} parent=1 // pred_check_branch
      %91 = sbr.rel (0) target = $region29
    $region28: #{_lambda_.1} parent=1 // pred_region
      _
    $region29: #{_lambda_.1} parent=1 // pred_fallthru
      _
    // Predicated region
    $region30: #{_lambda_.1} parent=1 // pred_check
      _
    $region31: #{_lambda_.1} parent=1 // pred_check_branch
      %93 = sbr.rel (0) target = $region33
    $region32: #{_lambda_.1} parent=1 // pred_region
      %s95 = ssub.s32 640, 640
      %96 = vsyncadd [#allocation8], %s95
      %s97 = sshll.u32 [#allocation9], 4
      %s98 = int_to_ptr.vmem [resolvable:$true] %s97
      %103 = dma.hbm_to_vmem [thread:$0]  %s7, 640, %s98, [#allocation8], 128, 128, 8
    $region33: #{_lambda_.1} parent=1 // pred_fallthru
      _
    // Predicated region
    $region34: #{_lambda_.1} parent=1 // pred_check
      _
    $region35: #{_lambda_.1} parent=1 // pred_check_branch
      %105 = sbr.rel (0) target = $region37
    $region36: #{_lambda_.1} parent=1 // pred_region
      %s107 = ssub.s32 256, 256
      %108 = vsyncadd [#allocation11], %s107
      %s109 = sshll.u32 [#allocation10], 4
      %s110 = int_to_ptr.vmem [resolvable:$true] %s109
      %115 = dma.hbm_to_vmem [thread:$0]  %s8, 256, %s110, [#allocation11], 128, 128, 8
    $region37: #{_lambda_.1} parent=1 // pred_fallthru
      _
    // Predicated region
    $region38: #{_lambda_.1} parent=1 // pred_check
      _
    $region39: #{_lambda_.1} parent=1 // pred_check_branch
      %117 = sbr.rel (0) target = $region41
    $region40: #{_lambda_.1} parent=1 // pred_region
      _
    $region41: #{_lambda_.1} parent=1 // pred_fallthru
      _
    // Predicated region
    $region42: #{_lambda_.1} parent=1 // pred_check
      _
    $region43: #{_lambda_.1} parent=1 // pred_check_branch
      %119 = sbr.rel (0) target = $region45
    $region44: #{_lambda_.1} parent=1 // pred_region
      %s121 = ssub.s32 640, 640
      %122 = vsyncadd [#allocation11], %s121
      %s123 = sshll.u32 [#allocation12], 4
      %s124 = int_to_ptr.vmem [resolvable:$true] %s123
      %129 = dma.hbm_to_vmem [thread:$0]  %s10, 640, %s124, [#allocation11], 128, 128, 8
    $region45: #{_lambda_.1} parent=1 // pred_fallthru
      _
    // Predicated region
    $region46: #{_lambda_.1} parent=1 // pred_check
      _
    $region47: #{_lambda_.1} parent=1 // pred_check_branch
      %131 = sbr.rel (0) target = $region49
    $region48: #{_lambda_.1} parent=1 // pred_region
      %s133 = ssub.s32 512, 512
      %134 = vsyncadd [#allocation14], %s133
      %s135 = sshll.u32 [#allocation13], 4
      %s136 = int_to_ptr.vmem [resolvable:$true] %s135
      %141 = dma.hbm_to_vmem [thread:$0]  %s11, 512, %s136, [#allocation14], 128, 128, 8
    $region49: #{_lambda_.1} parent=1 // pred_fallthru
      _
    // Predicated region
    $region50: #{_lambda_.1} parent=1 // pred_check
      _
    $region51: #{_lambda_.1} parent=1 // pred_check_branch
      %143 = sbr.rel (0) target = $region53
    $region52: #{_lambda_.1} parent=1 // pred_region
      _
    $region53: #{_lambda_.1} parent=1 // pred_fallthru
      _
    // Predicated region
    $region54: #{_lambda_.1} parent=1 // pred_check
      _
    $region55: #{_lambda_.1} parent=1 // pred_check_branch
      %145 = sbr.rel (0) target = $region57
    $region56: #{_lambda_.1} parent=1 // pred_region
      %s147 = ssub.s32 640, 640
      %148 = vsyncadd [#allocation14], %s147
      %s149 = sshll.u32 [#allocation15], 4
      %s150 = int_to_ptr.vmem [resolvable:$true] %s149
      %155 = dma.hbm_to_vmem [thread:$0]  %s13, 640, %s150, [#allocation14], 128, 128, 8
    $region57: #{_lambda_.1} parent=1 // pred_fallthru
      _
    // Predicated region
    $region58: #{_lambda_.1} parent=1 // pred_check
      _
    $region59: #{_lambda_.1} parent=1 // pred_check_branch
      %157 = sbr.rel (0) target = $region61
    $region60: #{_lambda_.1} parent=1 // pred_region
      %s159 = ssub.s32 512, 512
      %160 = vsyncadd [#allocation17], %s159
      %s161 = sshll.u32 [#allocation16], 4
      %s162 = int_to_ptr.vmem [resolvable:$true] %s161
      %167 = dma.hbm_to_vmem [thread:$0]  %s14, 512, %s162, [#allocation17], 128, 128, 8
    $region61: #{_lambda_.1} parent=1 // pred_fallthru
      _
    // Predicated region
    $region62: #{_lambda_.1} parent=1 // pred_check
      _
    $region63: #{_lambda_.1} parent=1 // pred_check_branch
      %169 = sbr.rel (0) target = $region65
    $region64: #{_lambda_.1} parent=1 // pred_region
      _
    $region65: #{_lambda_.1} parent=1 // pred_fallthru
      _
    // Predicated region
    $region66: #{_lambda_.1} parent=1 // pred_check
      _
    $region67: #{_lambda_.1} parent=1 // pred_check_branch
      %171 = sbr.rel (0) target = $region69
    $region68: #{_lambda_.1} parent=1 // pred_region
      _
    $region69: #{_lambda_.1} parent=1 // pred_fallthru
      _
    // Predicated region
    $region70: #{_lambda_.1} parent=1 // pred_check
      _
    $region71: #{_lambda_.1} parent=1 // pred_check_branch
      %173 = sbr.rel (0) target = $region73
    $region72: #{_lambda_.1} parent=1 // pred_region
      %s175 = ssub.s32 512, 512
      %176 = vsyncadd [#allocation17], %s175
      %s177 = sshll.u32 [#allocation18], 4
      %s178 = int_to_ptr.vmem [resolvable:$true] %s177
      %183 = dma.hbm_to_vmem [thread:$0]  %s17, 512, %s178, [#allocation17], 128, 128, 8
    $region73: #{_lambda_.1} parent=1 // pred_fallthru
      _
    // Predicated region
    $region74: #{_lambda_.1} parent=1 // pred_check
      _
    $region75: #{_lambda_.1} parent=1 // pred_check_branch
      %185 = sbr.rel (0) target = $region77
    $region76: #{_lambda_.1} parent=1 // pred_region
      _
    $region77: #{_lambda_.1} parent=1 // pred_fallthru
      _
    // Predicated region
    $region78: #{_lambda_.1} parent=1 // pred_check
      _
    $region79: #{_lambda_.1} parent=1 // pred_check_branch
      %187 = sbr.rel (0) target = $region81
    $region80: #{_lambda_.1} parent=1 // pred_region
      _
    $region81: #{_lambda_.1} parent=1 // pred_fallthru
      _
    // Predicated region
    $region82: #{_lambda_.1} parent=1 // pred_check
      _
    $region83: #{_lambda_.1} parent=1 // pred_check_branch
      %189 = sbr.rel (0) target = $region85
    $region84: #{_lambda_.1} parent=1 // pred_region
      %s191 = ssub.s32 512, 512
      %192 = vsyncadd [#allocation20], %s191
      %s193 = sshll.u32 [#allocation19], 4
      %s194 = int_to_ptr.vmem [resolvable:$true] %s193
      %199 = dma.hbm_to_vmem [thread:$0]  %s20, 512, %s194, [#allocation20], 128, 128, 8
    $region85: #{_lambda_.1} parent=1 // pred_fallthru
      _
    // Predicated region
    $region86: #{_lambda_.1} parent=1 // pred_check
      _
    $region87: #{_lambda_.1} parent=1 // pred_check_branch
      %201 = sbr.rel (0) target = $region89
    $region88: #{_lambda_.1} parent=1 // pred_region
      _
    $region89: #{_lambda_.1} parent=1 // pred_fallthru
      _
    // Predicated region
    $region90: #{_lambda_.1} parent=1 // pred_check
      _
    $region91: #{_lambda_.1} parent=1 // pred_check_branch
      %203 = sbr.rel (0) target = $region93
    $region92: #{_lambda_.1} parent=1 // pred_region
      _
    $region93: #{_lambda_.1} parent=1 // pred_fallthru
      _
    // Predicated region
    $region94: #{_lambda_.1} parent=1 // pred_check
      _
    $region95: #{_lambda_.1} parent=1 // pred_check_branch
      %205 = sbr.rel (0) target = $region97
    $region96: #{_lambda_.1} parent=1 // pred_region
      %s207 = ssub.s32 512, 512
      %208 = vsyncadd [#allocation20], %s207
      %s209 = sshll.u32 [#allocation21], 4
      %s210 = int_to_ptr.vmem [resolvable:$true] %s209
      %215 = dma.hbm_to_vmem [thread:$0]  %s23, 512, %s210, [#allocation20], 128, 128, 8
    $region97: #{_lambda_.1} parent=1 // pred_fallthru
      _
    // Predicated region
    $region98: #{_lambda_.1} parent=1 // pred_check
      _
    $region99: #{_lambda_.1} parent=1 // pred_check_branch
      %217 = sbr.rel (0) target = $region101
    $region100: #{_lambda_.1} parent=1 // pred_region
      _
    $region101: #{_lambda_.1} parent=1 // pred_fallthru
      _
    // Predicated region
    $region102: #{_lambda_.1} parent=1 // pred_check
      _
    $region103: #{_lambda_.1} parent=1 // pred_check_branch
      %219 = sbr.rel (0) target = $region105
    $region104: #{_lambda_.1} parent=1 // pred_region
      _
    $region105: #{_lambda_.1} parent=1 // pred_fallthru
      _
    // Predicated region
    $region106: #{_lambda_.1} parent=1 // pred_check
      _
    $region107: #{_lambda_.1} parent=1 // pred_check_branch
      %221 = sbr.rel (0) target = $region109
    $region108: #{_lambda_.1} parent=1 // pred_region
      _
    $region109: #{_lambda_.1} parent=1 // pred_fallthru
      _
    // Predicated region
    $region110: #{_lambda_.1} parent=1 // pred_check
      _
    $region111: #{_lambda_.1} parent=1 // pred_check_branch
      %223 = sbr.rel (0) target = $region113
    $region112: #{_lambda_.1} parent=1 // pred_region
      _
    $region113: #{_lambda_.1} parent=1 // pred_fallthru
      _
    // Predicated region
    $region114: #{_lambda_.1} parent=1 // pred_check
      _
    $region115: #{_lambda_.1} parent=1 // pred_check_branch
      %225 = sbr.rel (0) target = $region117
    $region116: #{_lambda_.1} parent=1 // pred_region
      %226 = dma.done [#allocation3], 640
    $region117: #{_lambda_.1} parent=1 // pred_fallthru
      _
    // Predicated region
    $region118: #{_lambda_.1} parent=1 // pred_check
      _
    $region119: #{_lambda_.1} parent=1 // pred_check_branch
      %228 = sbr.rel (0) target = $region121
    $region120: #{_lambda_.1} parent=1 // pred_region
      %229 = dma.done [#allocation5], 64
    $region121: #{_lambda_.1} parent=1 // pred_fallthru
      _
    // Predicated region
    $region122: #{_lambda_.1} parent=1 // pred_check
      _
    $region123: #{_lambda_.1} parent=1 // pred_check_branch
      %231 = sbr.rel (0) target = $region125
    $region124: #{_lambda_.1} parent=1 // pred_region
      %232 = dma.done [#allocation5], 640
    $region125: #{_lambda_.1} parent=1 // pred_fallthru
      _
    // Predicated region
    $region126: #{_lambda_.1} parent=1 // pred_check
      _
    $region127: #{_lambda_.1} parent=1 // pred_check_branch
      %234 = sbr.rel (0) target = $region129
    $region128: #{_lambda_.1} parent=1 // pred_region
      %235 = dma.done [#allocation8], 256
    $region129: #{_lambda_.1} parent=1 // pred_fallthru
      _
    // Predicated region
    $region130: #{_lambda_.1} parent=1 // pred_check
      _
    $region131: #{_lambda_.1} parent=1 // pred_check_branch
      %237 = sbr.rel (0) target = $region133
    $region132: #{_lambda_.1} parent=1 // pred_region
      %238 = dma.done [#allocation8], 640
    $region133: #{_lambda_.1} parent=1 // pred_fallthru
      _
    // Predicated region
    $region134: #{_lambda_.1} parent=1 // pred_check
      _
    $region135: #{_lambda_.1} parent=1 // pred_check_branch
      %240 = sbr.rel (0) target = $region137
    $region136: #{_lambda_.1} parent=1 // pred_region
      %241 = dma.done [#allocation11], 256
    $region137: #{_lambda_.1} parent=1 // pred_fallthru
      _
    // Predicated region
    $region138: #{_lambda_.1} parent=1 // pred_check
      _
    $region139: #{_lambda_.1} parent=1 // pred_check_branch
      %243 = sbr.rel (0) target = $region141
    $region140: #{_lambda_.1} parent=1 // pred_region
      %244 = dma.done [#allocation11], 640
    $region141: #{_lambda_.1} parent=1 // pred_fallthru
      _
    // Predicated region
    $region142: #{_lambda_.1} parent=1 // pred_check
      _
    $region143: #{_lambda_.1} parent=1 // pred_check_branch
      %246 = sbr.rel (0) target = $region145
    $region144: #{_lambda_.1} parent=1 // pred_region
      %247 = dma.done [#allocation14], 512
    $region145: #{_lambda_.1} parent=1 // pred_fallthru
      _
    // Predicated region
    $region146: #{_lambda_.1} parent=1 // pred_check
      _
    $region147: #{_lambda_.1} parent=1 // pred_check_branch
      %249 = sbr.rel (0) target = $region149
    $region148: #{_lambda_.1} parent=1 // pred_region
      %250 = dma.done [#allocation14], 640
    $region149: #{_lambda_.1} parent=1 // pred_fallthru
      _
    // Predicated region
    $region150: #{_lambda_.1} parent=1 // pred_check
      _
    $region151: #{_lambda_.1} parent=1 // pred_check_branch
      %252 = sbr.rel (0) target = $region153
    $region152: #{_lambda_.1} parent=1 // pred_region
      %253 = dma.done [#allocation17], 512
    $region153: #{_lambda_.1} parent=1 // pred_fallthru
      _
    // Predicated region
    $region154: #{_lambda_.1} parent=1 // pred_check
      _
    $region155: #{_lambda_.1} parent=1 // pred_check_branch
      %255 = sbr.rel (0) target = $region157
    $region156: #{_lambda_.1} parent=1 // pred_region
      %256 = dma.done [#allocation17], 512
    $region157: #{_lambda_.1} parent=1 // pred_fallthru
      _
    // Predicated region
    $region158: #{_lambda_.1} parent=1 // pred_check
      _
    $region159: #{_lambda_.1} parent=1 // pred_check_branch
      %258 = sbr.rel (0) target = $region161
    $region160: #{_lambda_.1} parent=1 // pred_region
      %259 = dma.done [#allocation20], 512
    $region161: #{_lambda_.1} parent=1 // pred_fallthru
      _
    // Predicated region
    $region162: #{_lambda_.1} parent=1 // pred_check
      _
    $region163: #{_lambda_.1} parent=1 // pred_check_branch
      %261 = sbr.rel (0) target = $region165
    $region164: #{_lambda_.1} parent=1 // pred_region
      %262 = dma.done [#allocation20], 512
    $region165: #{_lambda_.1} parent=1 // pred_fallthru
      _
    %v263 = vld [vmem:[#allocation2] sm:$0xff]
    %v264 = vld [vmem:[#allocation2 + $0x8] sm:$0xff]
    %v265 = vld [vmem:[#allocation2 + $0x10] sm:$0xff]
    %v266 = vld [vmem:[#allocation2 + $0x18] sm:$0xff]
    %v267 = vld [vmem:[#allocation2 + $0x20] sm:$0x3]
    %v268 = vld [vmem:[%s0] sm:$0xff]
    %v269 = vld [vmem:[%s0 + $0x8] sm:$0xff]
    %v270 = vld [vmem:[%s0 + $0x10] sm:$0xff]
    %v271 = vld [vmem:[%s0 + $0x18] sm:$0xff]
    %v272 = vld [vmem:[%s0 + $0x20] sm:$0x3]
    %v273 = vld [vmem:[#allocation4] sm:$0xf]
    %vm274 = vcmask 31744
    %v276 = vsel %vm274, %v268, 0
    %v279 = vsel %vm274, %v269, 0
    %v282 = vsel %vm274, %v270, 0
    %v285 = vsel %vm274, %v271, 0
    %v288 = vsel %vm274, %v272, 0
    %vm290 = vcmask 1043456
    %v292 = vsel %vm290, %v273, 0
    %294 = vmatprep.subr.mxu0 0.0
    %295 = vmatpush1.msra.mxu0 %v292
    %296 = vmatprep.subr.mxu0 0.0
    %297 = vmatpush1.msra.mxu0 0.0
    %298 = vmatprep.subr.mxu0 0.0
    %299 = vmatpush1.msra.mxu0 0.0
    %300 = vmatprep.subr.mxu0 0.0
    %301 = vmatpush1.msra.mxu0 0.0
    %302 = vmatprep.subr.mxu0 0.0
    %303 = vmatpush1.msra.mxu0 0.0
    %304 = vmatprep.subr.mxu0 0.0
    %305 = vmatpush1.msra.mxu0 0.0
    %306 = vmatprep.subr.mxu0 0.0
    %307 = vmatpush1.msra.mxu0 0.0
    %308 = vmatprep.subr.mxu0 0.0
    %309 = vmatpush1.msra.mxu0 0.0
    %310 = vmatprep.subr.mxu0 0.0
    %311 = vmatpush1.msra.mxu0 0.0
    %312 = vmatprep.subr.mxu0 0.0
    %313 = vmatpush1.msra.mxu0 0.0
    %314 = vmatprep.subr.mxu0 0.0
    %315 = vmatpush1.msra.mxu0 0.0
    %316 = vmatprep.subr.mxu0 0.0
    %317 = vmatpush1.msra.mxu0 0.0
    %318 = vmatprep.subr.mxu0 0.0
    %319 = vmatpush1.msra.mxu0 0.0
    %320 = vmatprep.subr.mxu0 0.0
    %321 = vmatpush1.msra.mxu0 0.0
    %322 = vmatprep.subr.mxu0 0.0
    %323 = vmatpush1.msra.mxu0 0.0
    %324 = vmatprep.subr.mxu0 0.0
    %325 = vmatpush1.msra.mxu0 0.0
    %326 = vmatprep.subr.mxu0 0.0
    %327 = vmatpush1.msra.mxu0 0.0
    %328 = vmatprep.subr.mxu0 0.0
    %329 = vmatpush1.msra.mxu0 0.0
    %330 = vmatprep.subr.mxu0 0.0
    %331 = vmatpush1.msra.mxu0 0.0
    %332 = vmatprep.subr.mxu0 0.0
    %333 = vmatpush1.msra.mxu0 0.0
    %334 = vmatprep.subr.mxu0 0.0
    %335 = vmatpush1.msra.mxu0 0.0
    %336 = vmatprep.subr.mxu0 0.0
    %337 = vmatpush1.msra.mxu0 0.0
    %338 = vmatprep.subr.mxu0 0.0
    %339 = vmatpush1.msra.mxu0 0.0
    %340 = vmatprep.subr.mxu0 0.0
    %341 = vmatpush1.msra.mxu0 0.0
    %342 = vmatprep.subr.mxu0 0.0
    %343 = vmatpush1.msra.mxu0 0.0
    %344 = vmatprep.subr.mxu0 0.0
    %345 = vmatpush1.msra.mxu0 0.0
    %346 = vmatprep.subr.mxu0 0.0
    %347 = vmatpush1.msra.mxu0 0.0
    %348 = vmatprep.subr.mxu0 0.0
    %349 = vmatpush1.msra.mxu0 0.0
    %350 = vmatprep.subr.mxu0 0.0
    %351 = vmatpush1.msra.mxu0 0.0
    %352 = vmatprep.subr.mxu0 0.0
    %353 = vmatpush1.msra.mxu0 0.0
    %354 = vmatprep.subr.mxu0 0.0
    %355 = vmatpush1.msra.mxu0 0.0
    %356 = vmatprep.subr.mxu0 0.0
    %357 = vmatpush1.msra.mxu0 0.0
    %358 = vmatprep.mubr.f32.mxu0 0.0
    %359 = vmatmul.mubr.f32.gmra.mrb[0].mxu0 %v276
    %v360 = vpop.f32.mrb[0].mxu0
    %v361 = vadd.f32 0.0, %v360
    %v362 = vpop.f32.mrb[0].mxu0
    %363 = vmatprep.mubr.f32.mxu0 0.0
    %364 = vmatmul.mubr.f32.gmra.mrb[0].mxu0 %v279
    %v365 = vpop.f32.mrb[0].mxu0
    %v366 = vadd.f32 0.0, %v365
    %v367 = vpop.f32.mrb[0].mxu0
    %368 = vmatprep.mubr.f32.mxu0 0.0
    %369 = vmatmul.mubr.f32.gmra.mrb[0].mxu0 %v282
    %v370 = vpop.f32.mrb[0].mxu0
    %v371 = vadd.f32 0.0, %v370
    %v372 = vpop.f32.mrb[0].mxu0
    %373 = vmatprep.mubr.f32.mxu0 0.0
    %374 = vmatmul.mubr.f32.gmra.mrb[0].mxu0 %v285
    %v375 = vpop.f32.mrb[0].mxu0
    %v376 = vadd.f32 0.0, %v375
    %v377 = vpop.f32.mrb[0].mxu0
    %378 = vmatprep.mubr.f32.mxu0 0.0
    %379 = vmatmul.mubr.f32.gmra.mrb[0].mxu0 %v288
    %v380 = vpop.f32.mrb[0].mxu0
    %v381 = vadd.f32 0.0, %v380
    %v382 = vpop.f32.mrb[0].mxu0
    %383 = vdwg.mxu0
    %vm384 = vcmask 277504
    %v386 = vsel %vm384, %v263, 0
    %v389 = vsel %vm384, %v264, 0
    %v392 = vsel %vm384, %v265, 0
    %v395 = vsel %vm384, %v266, 0
    %v398 = vsel %vm384, %v267, 0
    %vm400 = vcmask 1041408
    %v402 = vsel %vm400, %v381, 0
    %404 = vmatprep.subr.mxu0 0.0
    %405 = vmatpush1.msra.mxu0 %v361
    %406 = vmatprep.subr.mxu0 0.0
    %407 = vmatpush1.msra.mxu0 %v366
    %408 = vmatprep.subr.mxu0 0.0
    %409 = vmatpush1.msra.mxu0 %v371
    %410 = vmatprep.subr.mxu0 0.0
    %411 = vmatpush1.msra.mxu0 %v376
    %412 = vmatprep.subr.mxu0 0.0
    %413 = vmatpush1.msra.mxu0 %v402
    %414 = vmatprep.subr.mxu0 0.0
    %415 = vmatpush1.msra.mxu0 0.0
    %416 = vmatprep.subr.mxu0 0.0
    %417 = vmatpush1.msra.mxu0 0.0
    %418 = vmatprep.subr.mxu0 0.0
    %419 = vmatpush1.msra.mxu0 0.0
    %420 = vmatprep.subr.mxu0 0.0
    %421 = vmatpush1.msra.mxu0 0.0
    %422 = vmatprep.subr.mxu0 0.0
    %423 = vmatpush1.msra.mxu0 0.0
    %424 = vmatprep.subr.mxu0 0.0
    %425 = vmatpush1.msra.mxu0 0.0
    %426 = vmatprep.subr.mxu0 0.0
    %427 = vmatpush1.msra.mxu0 0.0
    %428 = vmatprep.subr.mxu0 0.0
    %429 = vmatpush1.msra.mxu0 0.0
    %430 = vmatprep.subr.mxu0 0.0
    %431 = vmatpush1.msra.mxu0 0.0
    %432 = vmatprep.subr.mxu0 0.0
    %433 = vmatpush1.msra.mxu0 0.0
    %434 = vmatprep.subr.mxu0 0.0
    %435 = vmatpush1.msra.mxu0 0.0
    %436 = vmatprep.subr.mxu0 0.0
    %437 = vmatpush1.msra.mxu0 0.0
    %438 = vmatprep.subr.mxu0 0.0
    %439 = vmatpush1.msra.mxu0 0.0
    %440 = vmatprep.subr.mxu0 0.0
    %441 = vmatpush1.msra.mxu0 0.0
    %442 = vmatprep.subr.mxu0 0.0
    %443 = vmatpush1.msra.mxu0 0.0
    %444 = vmatprep.subr.mxu0 0.0
    %445 = vmatpush1.msra.mxu0 0.0
    %446 = vmatprep.subr.mxu0 0.0
    %447 = vmatpush1.msra.mxu0 0.0
    %448 = vmatprep.subr.mxu0 0.0
    %449 = vmatpush1.msra.mxu0 0.0
    %450 = vmatprep.subr.mxu0 0.0
    %451 = vmatpush1.msra.mxu0 0.0
    %452 = vmatprep.subr.mxu0 0.0
    %453 = vmatpush1.msra.mxu0 0.0
    %454 = vmatprep.subr.mxu0 0.0
    %455 = vmatpush1.msra.mxu0 0.0
    %456 = vmatprep.subr.mxu0 0.0
    %457 = vmatpush1.msra.mxu0 0.0
    %458 = vmatprep.subr.mxu0 0.0
    %459 = vmatpush1.msra.mxu0 0.0
    %460 = vmatprep.subr.mxu0 0.0
    %461 = vmatpush1.msra.mxu0 0.0
    %462 = vmatprep.subr.mxu0 0.0
    %463 = vmatpush1.msra.mxu0 0.0
    %464 = vmatprep.subr.mxu0 0.0
    %465 = vmatpush1.msra.mxu0 0.0
    %466 = vmatprep.subr.mxu0 0.0
    %467 = vmatpush1.msra.mxu0 0.0
    %468 = vmatprep.mubr.f32.mxu0 0.0
    %469 = vmatmul.mubr.f32.gmra.mrb[0].mxu0 %v386
    %v470 = vpop.f32.mrb[0].mxu0
    %v471 = vadd.f32 0.0, %v470
    %v472 = vpop.f32.mrb[0].mxu0
    %473 = vmatprep.mubr.f32.mxu0 0.0
    %474 = vmatmul.mubr.f32.gmra.mrb[0].mxu0 %v389
    %v475 = vpop.f32.mrb[0].mxu0
    %v476 = vadd.f32 0.0, %v475
    %v477 = vpop.f32.mrb[0].mxu0
    %478 = vmatprep.mubr.f32.mxu0 0.0
    %479 = vmatmul.mubr.f32.gmra.mrb[0].mxu0 %v392
    %v480 = vpop.f32.mrb[0].mxu0
    %v481 = vadd.f32 0.0, %v480
    %v482 = vpop.f32.mrb[0].mxu0
    %483 = vmatprep.mubr.f32.mxu0 0.0
    %484 = vmatmul.mubr.f32.gmra.mrb[0].mxu0 %v395
    %v485 = vpop.f32.mrb[0].mxu0
    %v486 = vadd.f32 0.0, %v485
    %v487 = vpop.f32.mrb[0].mxu0
    %488 = vmatprep.mubr.f32.mxu0 0.0
    %489 = vmatmul.mubr.f32.gmra.mrb[0].mxu0 %v398
    %v490 = vpop.f32.mrb[0].mxu0
    %v491 = vadd.f32 0.0, %v490
    %v492 = vpop.f32.mrb[0].mxu0
    %493 = vdwg.mxu0
    %v494 = vld [vmem:[%s3] sm:$0xff]
    %v495 = vld [vmem:[%s3 + $0x8] sm:$0xff]
    %v496 = vld [vmem:[%s3 + $0x10] sm:$0xff]
    %v497 = vld [vmem:[%s3 + $0x18] sm:$0xff]
    %v498 = vld [vmem:[%s3 + $0x20] sm:$0x3]
    %v499 = vmul.f32 %v471, %v494
    %v500 = vmul.f32 %v476, %v495
    %v501 = vmul.f32 %v481, %v496
    %v502 = vmul.f32 %v486, %v497
    %v503 = vmul.f32 %v491, %v498
    %v504 = vld [vmem:[#allocation6] sm:$0xff]
    %v505 = vld [vmem:[#allocation6 + $0x8] sm:$0xff]
    %v506 = vld [vmem:[#allocation6 + $0x10] sm:$0xff]
    %v507 = vld [vmem:[#allocation6 + $0x18] sm:$0xff]
    %v508 = vld [vmem:[#allocation6 + $0x20] sm:$0x3]
    %v509 = vadd.f32 %v499, %v504
    %v510 = vadd.f32 %v500, %v505
    %v511 = vadd.f32 %v501, %v506
    %v512 = vadd.f32 %v502, %v507
    %v513 = vadd.f32 %v503, %v508
    %v514 = vmax.f32 %v509, 0.0
    %v515 = vmax.f32 %v510, 0.0
    %v516 = vmax.f32 %v511, 0.0
    %v517 = vmax.f32 %v512, 0.0
    %v518 = vmax.f32 %v513, 0.0
    %v519 = vld [vmem:[#allocation7] sm:$0xff]
    %v520 = vld [vmem:[#allocation7 + $0x8] sm:$0xff]
    %vm521 = vcmask 130048
    %v523 = vsel %vm521, %v514, 0
    %v526 = vsel %vm521, %v515, 0
    %v529 = vsel %vm521, %v516, 0
    %v532 = vsel %vm521, %v517, 0
    %v535 = vsel %vm521, %v518, 0
    %537 = vmatprep.subr.mxu0 0.0
    %538 = vmatpush1.msra.mxu0 %v519
    %539 = vmatprep.subr.mxu0 0.0
    %540 = vmatpush1.msra.mxu0 %v520
    %541 = vmatprep.subr.mxu0 0.0
    %542 = vmatpush1.msra.mxu0 0.0
    %543 = vmatprep.subr.mxu0 0.0
    %544 = vmatpush1.msra.mxu0 0.0
    %545 = vmatprep.subr.mxu0 0.0
    %546 = vmatpush1.msra.mxu0 0.0
    %547 = vmatprep.subr.mxu0 0.0
    %548 = vmatpush1.msra.mxu0 0.0
    %549 = vmatprep.subr.mxu0 0.0
    %550 = vmatpush1.msra.mxu0 0.0
    %551 = vmatprep.subr.mxu0 0.0
    %552 = vmatpush1.msra.mxu0 0.0
    %553 = vmatprep.subr.mxu0 0.0
    %554 = vmatpush1.msra.mxu0 0.0
    %555 = vmatprep.subr.mxu0 0.0
    %556 = vmatpush1.msra.mxu0 0.0
    %557 = vmatprep.subr.mxu0 0.0
    %558 = vmatpush1.msra.mxu0 0.0
    %559 = vmatprep.subr.mxu0 0.0
    %560 = vmatpush1.msra.mxu0 0.0
    %561 = vmatprep.subr.mxu0 0.0
    %562 = vmatpush1.msra.mxu0 0.0
    %563 = vmatprep.subr.mxu0 0.0
    %564 = vmatpush1.msra.mxu0 0.0
    %565 = vmatprep.subr.mxu0 0.0
    %566 = vmatpush1.msra.mxu0 0.0
    %567 = vmatprep.subr.mxu0 0.0
    %568 = vmatpush1.msra.mxu0 0.0
    %569 = vmatprep.subr.mxu0 0.0
    %570 = vmatpush1.msra.mxu0 0.0
    %571 = vmatprep.subr.mxu0 0.0
    %572 = vmatpush1.msra.mxu0 0.0
    %573 = vmatprep.subr.mxu0 0.0
    %574 = vmatpush1.msra.mxu0 0.0
    %575 = vmatprep.subr.mxu0 0.0
    %576 = vmatpush1.msra.mxu0 0.0
    %577 = vmatprep.subr.mxu0 0.0
    %578 = vmatpush1.msra.mxu0 0.0
    %579 = vmatprep.subr.mxu0 0.0
    %580 = vmatpush1.msra.mxu0 0.0
    %581 = vmatprep.subr.mxu0 0.0
    %582 = vmatpush1.msra.mxu0 0.0
    %583 = vmatprep.subr.mxu0 0.0
    %584 = vmatpush1.msra.mxu0 0.0
    %585 = vmatprep.subr.mxu0 0.0
    %586 = vmatpush1.msra.mxu0 0.0
    %587 = vmatprep.subr.mxu0 0.0
    %588 = vmatpush1.msra.mxu0 0.0
    %589 = vmatprep.subr.mxu0 0.0
    %590 = vmatpush1.msra.mxu0 0.0
    %591 = vmatprep.subr.mxu0 0.0
    %592 = vmatpush1.msra.mxu0 0.0
    %593 = vmatprep.subr.mxu0 0.0
    %594 = vmatpush1.msra.mxu0 0.0
    %595 = vmatprep.subr.mxu0 0.0
    %596 = vmatpush1.msra.mxu0 0.0
    %597 = vmatprep.subr.mxu0 0.0
    %598 = vmatpush1.msra.mxu0 0.0
    %599 = vmatprep.subr.mxu0 0.0
    %600 = vmatpush1.msra.mxu0 0.0
    %601 = vmatprep.mubr.f32.mxu0 0.0
    %602 = vmatmul.mubr.f32.gmra.mrb[0].mxu0 %v523
    %v603 = vpop.f32.mrb[0].mxu0
    %v604 = vadd.f32 0.0, %v603
    %v605 = vpop.f32.mrb[0].mxu0
    %606 = vmatprep.mubr.f32.mxu0 0.0
    %607 = vmatmul.mubr.f32.gmra.mrb[0].mxu0 %v526
    %v608 = vpop.f32.mrb[0].mxu0
    %v609 = vadd.f32 0.0, %v608
    %v610 = vpop.f32.mrb[0].mxu0
    %611 = vmatprep.mubr.f32.mxu0 0.0
    %612 = vmatmul.mubr.f32.gmra.mrb[0].mxu0 %v529
    %v613 = vpop.f32.mrb[0].mxu0
    %v614 = vadd.f32 0.0, %v613
    %v615 = vpop.f32.mrb[0].mxu0
    %616 = vmatprep.mubr.f32.mxu0 0.0
    %617 = vmatmul.mubr.f32.gmra.mrb[0].mxu0 %v532
    %v618 = vpop.f32.mrb[0].mxu0
    %v619 = vadd.f32 0.0, %v618
    %v620 = vpop.f32.mrb[0].mxu0
    %621 = vmatprep.mubr.f32.mxu0 0.0
    %622 = vmatmul.mubr.f32.gmra.mrb[0].mxu0 %v535
    %v623 = vpop.f32.mrb[0].mxu0
    %v624 = vadd.f32 0.0, %v623
    %v625 = vpop.f32.mrb[0].mxu0
    %626 = vdwg.mxu0
    %v628 = vsel %vm400, %v624, 0
    %630 = vmatprep.subr.mxu0 0.0
    %631 = vmatpush1.msra.mxu0 %v604
    %632 = vmatprep.subr.mxu0 0.0
    %633 = vmatpush1.msra.mxu0 %v609
    %634 = vmatprep.subr.mxu0 0.0
    %635 = vmatpush1.msra.mxu0 %v614
    %636 = vmatprep.subr.mxu0 0.0
    %637 = vmatpush1.msra.mxu0 %v619
    %638 = vmatprep.subr.mxu0 0.0
    %639 = vmatpush1.msra.mxu0 %v628
    %640 = vmatprep.subr.mxu0 0.0
    %641 = vmatpush1.msra.mxu0 0.0
    %642 = vmatprep.subr.mxu0 0.0
    %643 = vmatpush1.msra.mxu0 0.0
    %644 = vmatprep.subr.mxu0 0.0
    %645 = vmatpush1.msra.mxu0 0.0
    %646 = vmatprep.subr.mxu0 0.0
    %647 = vmatpush1.msra.mxu0 0.0
    %648 = vmatprep.subr.mxu0 0.0
    %649 = vmatpush1.msra.mxu0 0.0
    %650 = vmatprep.subr.mxu0 0.0
    %651 = vmatpush1.msra.mxu0 0.0
    %652 = vmatprep.subr.mxu0 0.0
    %653 = vmatpush1.msra.mxu0 0.0
    %654 = vmatprep.subr.mxu0 0.0
    %655 = vmatpush1.msra.mxu0 0.0
    %656 = vmatprep.subr.mxu0 0.0
    %657 = vmatpush1.msra.mxu0 0.0
    %658 = vmatprep.subr.mxu0 0.0
    %659 = vmatpush1.msra.mxu0 0.0
    %660 = vmatprep.subr.mxu0 0.0
    %661 = vmatpush1.msra.mxu0 0.0
    %662 = vmatprep.subr.mxu0 0.0
    %663 = vmatpush1.msra.mxu0 0.0
    %664 = vmatprep.subr.mxu0 0.0
    %665 = vmatpush1.msra.mxu0 0.0
    %666 = vmatprep.subr.mxu0 0.0
    %667 = vmatpush1.msra.mxu0 0.0
    %668 = vmatprep.subr.mxu0 0.0
    %669 = vmatpush1.msra.mxu0 0.0
    %670 = vmatprep.subr.mxu0 0.0
    %671 = vmatpush1.msra.mxu0 0.0
    %672 = vmatprep.subr.mxu0 0.0
    %673 = vmatpush1.msra.mxu0 0.0
    %674 = vmatprep.subr.mxu0 0.0
    %675 = vmatpush1.msra.mxu0 0.0
    %676 = vmatprep.subr.mxu0 0.0
    %677 = vmatpush1.msra.mxu0 0.0
    %678 = vmatprep.subr.mxu0 0.0
    %679 = vmatpush1.msra.mxu0 0.0
    %680 = vmatprep.subr.mxu0 0.0
    %681 = vmatpush1.msra.mxu0 0.0
    %682 = vmatprep.subr.mxu0 0.0
    %683 = vmatpush1.msra.mxu0 0.0
    %684 = vmatprep.subr.mxu0 0.0
    %685 = vmatpush1.msra.mxu0 0.0
    %686 = vmatprep.subr.mxu0 0.0
    %687 = vmatpush1.msra.mxu0 0.0
    %688 = vmatprep.subr.mxu0 0.0
    %689 = vmatpush1.msra.mxu0 0.0
    %690 = vmatprep.subr.mxu0 0.0
    %691 = vmatpush1.msra.mxu0 0.0
    %692 = vmatprep.subr.mxu0 0.0
    %693 = vmatpush1.msra.mxu0 0.0
    %694 = vmatprep.mubr.f32.mxu0 0.0
    %695 = vmatmul.mubr.f32.gmra.mrb[0].mxu0 %v386
    %v696 = vpop.f32.mrb[0].mxu0
    %v697 = vadd.f32 0.0, %v696
    %v698 = vpop.f32.mrb[0].mxu0
    %699 = vmatprep.mubr.f32.mxu0 0.0
    %700 = vmatmul.mubr.f32.gmra.mrb[0].mxu0 %v389
    %v701 = vpop.f32.mrb[0].mxu0
    %v702 = vadd.f32 0.0, %v701
    %v703 = vpop.f32.mrb[0].mxu0
    %704 = vmatprep.mubr.f32.mxu0 0.0
    %705 = vmatmul.mubr.f32.gmra.mrb[0].mxu0 %v392
    %v706 = vpop.f32.mrb[0].mxu0
    %v707 = vadd.f32 0.0, %v706
    %v708 = vpop.f32.mrb[0].mxu0
    %709 = vmatprep.mubr.f32.mxu0 0.0
    %710 = vmatmul.mubr.f32.gmra.mrb[0].mxu0 %v395
    %v711 = vpop.f32.mrb[0].mxu0
    %v712 = vadd.f32 0.0, %v711
    %v713 = vpop.f32.mrb[0].mxu0
    %714 = vmatprep.mubr.f32.mxu0 0.0
    %715 = vmatmul.mubr.f32.gmra.mrb[0].mxu0 %v398
    %v716 = vpop.f32.mrb[0].mxu0
    %v717 = vadd.f32 0.0, %v716
    %v718 = vpop.f32.mrb[0].mxu0
    %719 = vdwg.mxu0
    %v720 = vld [vmem:[%s6] sm:$0xff]
    %v721 = vld [vmem:[%s6 + $0x8] sm:$0xff]
    %v722 = vld [vmem:[%s6 + $0x10] sm:$0xff]
    %v723 = vld [vmem:[%s6 + $0x18] sm:$0xff]
    %v724 = vld [vmem:[%s6 + $0x20] sm:$0x3]
    %v725 = vmul.f32 %v697, %v720
    %v726 = vmul.f32 %v702, %v721
    %v727 = vmul.f32 %v707, %v722
    %v728 = vmul.f32 %v712, %v723
    %v729 = vmul.f32 %v717, %v724
    %v730 = vld [vmem:[#allocation9] sm:$0xff]
    %v731 = vld [vmem:[#allocation9 + $0x8] sm:$0xff]
    %v732 = vld [vmem:[#allocation9 + $0x10] sm:$0xff]
    %v733 = vld [vmem:[#allocation9 + $0x18] sm:$0xff]
    %v734 = vld [vmem:[#allocation9 + $0x20] sm:$0x3]
    %v735 = vadd.f32 %v725, %v730
    %v736 = vadd.f32 %v726, %v731
    %v737 = vadd.f32 %v727, %v732
    %v738 = vadd.f32 %v728, %v733
    %v739 = vadd.f32 %v729, %v734
    %v740 = vld [vmem:[#allocation10] sm:$0xff]
    %v741 = vld [vmem:[#allocation10 + $0x8] sm:$0xff]
    %742 = vmatprep.subr.mxu0 0.0
    %743 = vmatpush1.msra.mxu0 %v740
    %744 = vmatprep.subr.mxu0 0.0
    %745 = vmatpush1.msra.mxu0 %v741
    %746 = vmatprep.subr.mxu0 0.0
    %747 = vmatpush1.msra.mxu0 0.0
    %748 = vmatprep.subr.mxu0 0.0
    %749 = vmatpush1.msra.mxu0 0.0
    %750 = vmatprep.subr.mxu0 0.0
    %751 = vmatpush1.msra.mxu0 0.0
    %752 = vmatprep.subr.mxu0 0.0
    %753 = vmatpush1.msra.mxu0 0.0
    %754 = vmatprep.subr.mxu0 0.0
    %755 = vmatpush1.msra.mxu0 0.0
    %756 = vmatprep.subr.mxu0 0.0
    %757 = vmatpush1.msra.mxu0 0.0
    %758 = vmatprep.subr.mxu0 0.0
    %759 = vmatpush1.msra.mxu0 0.0
    %760 = vmatprep.subr.mxu0 0.0
    %761 = vmatpush1.msra.mxu0 0.0
    %762 = vmatprep.subr.mxu0 0.0
    %763 = vmatpush1.msra.mxu0 0.0
    %764 = vmatprep.subr.mxu0 0.0
    %765 = vmatpush1.msra.mxu0 0.0
    %766 = vmatprep.subr.mxu0 0.0
    %767 = vmatpush1.msra.mxu0 0.0
    %768 = vmatprep.subr.mxu0 0.0
    %769 = vmatpush1.msra.mxu0 0.0
    %770 = vmatprep.subr.mxu0 0.0
    %771 = vmatpush1.msra.mxu0 0.0
    %772 = vmatprep.subr.mxu0 0.0
    %773 = vmatpush1.msra.mxu0 0.0
    %774 = vmatprep.subr.mxu0 0.0
    %775 = vmatpush1.msra.mxu0 0.0
    %776 = vmatprep.subr.mxu0 0.0
    %777 = vmatpush1.msra.mxu0 0.0
    %778 = vmatprep.subr.mxu0 0.0
    %779 = vmatpush1.msra.mxu0 0.0
    %780 = vmatprep.subr.mxu0 0.0
    %781 = vmatpush1.msra.mxu0 0.0
    %782 = vmatprep.subr.mxu0 0.0
    %783 = vmatpush1.msra.mxu0 0.0
    %784 = vmatprep.subr.mxu0 0.0
    %785 = vmatpush1.msra.mxu0 0.0
    %786 = vmatprep.subr.mxu0 0.0
    %787 = vmatpush1.msra.mxu0 0.0
    %788 = vmatprep.subr.mxu0 0.0
    %789 = vmatpush1.msra.mxu0 0.0
    %790 = vmatprep.subr.mxu0 0.0
    %791 = vmatpush1.msra.mxu0 0.0
    %792 = vmatprep.subr.mxu0 0.0
    %793 = vmatpush1.msra.mxu0 0.0
    %794 = vmatprep.subr.mxu0 0.0
    %795 = vmatpush1.msra.mxu0 0.0
    %796 = vmatprep.subr.mxu0 0.0
    %797 = vmatpush1.msra.mxu0 0.0
    %798 = vmatprep.subr.mxu0 0.0
    %799 = vmatpush1.msra.mxu0 0.0
    %800 = vmatprep.subr.mxu0 0.0
    %801 = vmatpush1.msra.mxu0 0.0
    %802 = vmatprep.subr.mxu0 0.0
    %803 = vmatpush1.msra.mxu0 0.0
    %804 = vmatprep.subr.mxu0 0.0
    %805 = vmatpush1.msra.mxu0 0.0
    %806 = vmatprep.mubr.f32.mxu0 0.0
    %807 = vmatmul.mubr.f32.gmra.mrb[0].mxu0 %v523
    %v808 = vpop.f32.mrb[0].mxu0
    %v809 = vadd.f32 0.0, %v808
    %v810 = vpop.f32.mrb[0].mxu0
    %811 = vmatprep.mubr.f32.mxu0 0.0
    %812 = vmatmul.mubr.f32.gmra.mrb[0].mxu0 %v526
    %v813 = vpop.f32.mrb[0].mxu0
    %v814 = vadd.f32 0.0, %v813
    %v815 = vpop.f32.mrb[0].mxu0
    %816 = vmatprep.mubr.f32.mxu0 0.0
    %817 = vmatmul.mubr.f32.gmra.mrb[0].mxu0 %v529
    %v818 = vpop.f32.mrb[0].mxu0
    %v819 = vadd.f32 0.0, %v818
    %v820 = vpop.f32.mrb[0].mxu0
    %821 = vmatprep.mubr.f32.mxu0 0.0
    %822 = vmatmul.mubr.f32.gmra.mrb[0].mxu0 %v532
    %v823 = vpop.f32.mrb[0].mxu0
    %v824 = vadd.f32 0.0, %v823
    %v825 = vpop.f32.mrb[0].mxu0
    %826 = vmatprep.mubr.f32.mxu0 0.0
    %827 = vmatmul.mubr.f32.gmra.mrb[0].mxu0 %v535
    %v828 = vpop.f32.mrb[0].mxu0
    %v829 = vadd.f32 0.0, %v828
    %v830 = vpop.f32.mrb[0].mxu0
    %831 = vdwg.mxu0
    %v833 = vsel %vm400, %v829, 0
    %835 = vmatprep.subr.mxu0 0.0
    %836 = vmatpush1.msra.mxu0 %v809
    %837 = vmatprep.subr.mxu0 0.0
    %838 = vmatpush1.msra.mxu0 %v814
    %839 = vmatprep.subr.mxu0 0.0
    %840 = vmatpush1.msra.mxu0 %v819
    %841 = vmatprep.subr.mxu0 0.0
    %842 = vmatpush1.msra.mxu0 %v824
    %843 = vmatprep.subr.mxu0 0.0
    %844 = vmatpush1.msra.mxu0 %v833
    %845 = vmatprep.subr.mxu0 0.0
    %846 = vmatpush1.msra.mxu0 0.0
    %847 = vmatprep.subr.mxu0 0.0
    %848 = vmatpush1.msra.mxu0 0.0
    %849 = vmatprep.subr.mxu0 0.0
    %850 = vmatpush1.msra.mxu0 0.0
    %851 = vmatprep.subr.mxu0 0.0
    %852 = vmatpush1.msra.mxu0 0.0
    %853 = vmatprep.subr.mxu0 0.0
    %854 = vmatpush1.msra.mxu0 0.0
    %855 = vmatprep.subr.mxu0 0.0
    %856 = vmatpush1.msra.mxu0 0.0
    %857 = vmatprep.subr.mxu0 0.0
    %858 = vmatpush1.msra.mxu0 0.0
    %859 = vmatprep.subr.mxu0 0.0
    %860 = vmatpush1.msra.mxu0 0.0
    %861 = vmatprep.subr.mxu0 0.0
    %862 = vmatpush1.msra.mxu0 0.0
    %863 = vmatprep.subr.mxu0 0.0
    %864 = vmatpush1.msra.mxu0 0.0
    %865 = vmatprep.subr.mxu0 0.0
    %866 = vmatpush1.msra.mxu0 0.0
    %867 = vmatprep.subr.mxu0 0.0
    %868 = vmatpush1.msra.mxu0 0.0
    %869 = vmatprep.subr.mxu0 0.0
    %870 = vmatpush1.msra.mxu0 0.0
    %871 = vmatprep.subr.mxu0 0.0
    %872 = vmatpush1.msra.mxu0 0.0
    %873 = vmatprep.subr.mxu0 0.0
    %874 = vmatpush1.msra.mxu0 0.0
    %875 = vmatprep.subr.mxu0 0.0
    %876 = vmatpush1.msra.mxu0 0.0
    %877 = vmatprep.subr.mxu0 0.0
    %878 = vmatpush1.msra.mxu0 0.0
    %879 = vmatprep.subr.mxu0 0.0
    %880 = vmatpush1.msra.mxu0 0.0
    %881 = vmatprep.subr.mxu0 0.0
    %882 = vmatpush1.msra.mxu0 0.0
    %883 = vmatprep.subr.mxu0 0.0
    %884 = vmatpush1.msra.mxu0 0.0
    %885 = vmatprep.subr.mxu0 0.0
    %886 = vmatpush1.msra.mxu0 0.0
    %887 = vmatprep.subr.mxu0 0.0
    %888 = vmatpush1.msra.mxu0 0.0
    %889 = vmatprep.subr.mxu0 0.0
    %890 = vmatpush1.msra.mxu0 0.0
    %891 = vmatprep.subr.mxu0 0.0
    %892 = vmatpush1.msra.mxu0 0.0
    %893 = vmatprep.subr.mxu0 0.0
    %894 = vmatpush1.msra.mxu0 0.0
    %895 = vmatprep.subr.mxu0 0.0
    %896 = vmatpush1.msra.mxu0 0.0
    %897 = vmatprep.subr.mxu0 0.0
    %898 = vmatpush1.msra.mxu0 0.0
    %899 = vmatprep.mubr.f32.mxu0 0.0
    %900 = vmatmul.mubr.f32.gmra.mrb[0].mxu0 %v386
    %v901 = vpop.f32.mrb[0].mxu0
    %v902 = vadd.f32 0.0, %v901
    %v903 = vpop.f32.mrb[0].mxu0
    %904 = vmatprep.mubr.f32.mxu0 0.0
    %905 = vmatmul.mubr.f32.gmra.mrb[0].mxu0 %v389
    %v906 = vpop.f32.mrb[0].mxu0
    %v907 = vadd.f32 0.0, %v906
    %v908 = vpop.f32.mrb[0].mxu0
    %909 = vmatprep.mubr.f32.mxu0 0.0
    %910 = vmatmul.mubr.f32.gmra.mrb[0].mxu0 %v392
    %v911 = vpop.f32.mrb[0].mxu0
    %v912 = vadd.f32 0.0, %v911
    %v913 = vpop.f32.mrb[0].mxu0
    %914 = vmatprep.mubr.f32.mxu0 0.0
    %915 = vmatmul.mubr.f32.gmra.mrb[0].mxu0 %v395
    %v916 = vpop.f32.mrb[0].mxu0
    %v917 = vadd.f32 0.0, %v916
    %v918 = vpop.f32.mrb[0].mxu0
    %919 = vmatprep.mubr.f32.mxu0 0.0
    %920 = vmatmul.mubr.f32.gmra.mrb[0].mxu0 %v398
    %v921 = vpop.f32.mrb[0].mxu0
    %v922 = vadd.f32 0.0, %v921
    %v923 = vpop.f32.mrb[0].mxu0
    %924 = vdwg.mxu0
    %v925 = vld [vmem:[%s9] sm:$0xff]
    %v926 = vld [vmem:[%s9 + $0x8] sm:$0xff]
    %v927 = vld [vmem:[%s9 + $0x10] sm:$0xff]
    %v928 = vld [vmem:[%s9 + $0x18] sm:$0xff]
    %v929 = vld [vmem:[%s9 + $0x20] sm:$0x3]
    %v930 = vmul.f32 %v902, %v925
    %v931 = vmul.f32 %v907, %v926
    %v932 = vmul.f32 %v912, %v927
    %v933 = vmul.f32 %v917, %v928
    %v934 = vmul.f32 %v922, %v929
    %v935 = vld [vmem:[#allocation12] sm:$0xff]
    %v936 = vld [vmem:[#allocation12 + $0x8] sm:$0xff]
    %v937 = vld [vmem:[#allocation12 + $0x10] sm:$0xff]
    %v938 = vld [vmem:[#allocation12 + $0x18] sm:$0xff]
    %v939 = vld [vmem:[#allocation12 + $0x20] sm:$0x3]
    %v940 = vadd.f32 %v930, %v935
    %v941 = vadd.f32 %v931, %v936
    %v942 = vadd.f32 %v932, %v937
    %v943 = vadd.f32 %v933, %v938
    %v944 = vadd.f32 %v934, %v939
    %v945 = vmax.f32 %v940, 0.0
    %v946 = vmax.f32 %v941, 0.0
    %v947 = vmax.f32 %v942, 0.0
    %v948 = vmax.f32 %v943, 0.0
    %v949 = vmax.f32 %v944, 0.0
    %v950 = vld [vmem:[#allocation13] sm:$0xff]
    %v951 = vld [vmem:[#allocation13 + $0x8] sm:$0xff]
    %v952 = vld [vmem:[#allocation13 + $0x10] sm:$0xff]
    %v953 = vld [vmem:[#allocation13 + $0x18] sm:$0xff]
    %vm954 = vcmask 261120
    %v956 = vsel %vm954, %v945, 0
    %v959 = vsel %vm954, %v946, 0
    %v962 = vsel %vm954, %v947, 0
    %v965 = vsel %vm954, %v948, 0
    %v968 = vsel %vm954, %v949, 0
    %970 = vmatprep.subr.mxu0 0.0
    %971 = vmatpush1.msra.mxu0 %v950
    %972 = vmatprep.subr.mxu0 0.0
    %973 = vmatpush1.msra.mxu0 %v951
    %974 = vmatprep.subr.mxu0 0.0
    %975 = vmatpush1.msra.mxu0 %v952
    %976 = vmatprep.subr.mxu0 0.0
    %977 = vmatpush1.msra.mxu0 %v953
    %978 = vmatprep.subr.mxu0 0.0
    %979 = vmatpush1.msra.mxu0 0.0
    %980 = vmatprep.subr.mxu0 0.0
    %981 = vmatpush1.msra.mxu0 0.0
    %982 = vmatprep.subr.mxu0 0.0
    %983 = vmatpush1.msra.mxu0 0.0
    %984 = vmatprep.subr.mxu0 0.0
    %985 = vmatpush1.msra.mxu0 0.0
    %986 = vmatprep.subr.mxu0 0.0
    %987 = vmatpush1.msra.mxu0 0.0
    %988 = vmatprep.subr.mxu0 0.0
    %989 = vmatpush1.msra.mxu0 0.0
    %990 = vmatprep.subr.mxu0 0.0
    %991 = vmatpush1.msra.mxu0 0.0
    %992 = vmatprep.subr.mxu0 0.0
    %993 = vmatpush1.msra.mxu0 0.0
    %994 = vmatprep.subr.mxu0 0.0
    %995 = vmatpush1.msra.mxu0 0.0
    %996 = vmatprep.subr.mxu0 0.0
    %997 = vmatpush1.msra.mxu0 0.0
    %998 = vmatprep.subr.mxu0 0.0
    %999 = vmatpush1.msra.mxu0 0.0
    %1000 = vmatprep.subr.mxu0 0.0
    %1001 = vmatpush1.msra.mxu0 0.0
    %1002 = vmatprep.subr.mxu0 0.0
    %1003 = vmatpush1.msra.mxu0 0.0
    %1004 = vmatprep.subr.mxu0 0.0
    %1005 = vmatpush1.msra.mxu0 0.0
    %1006 = vmatprep.subr.mxu0 0.0
    %1007 = vmatpush1.msra.mxu0 0.0
    %1008 = vmatprep.subr.mxu0 0.0
    %1009 = vmatpush1.msra.mxu0 0.0
    %1010 = vmatprep.subr.mxu0 0.0
    %1011 = vmatpush1.msra.mxu0 0.0
    %1012 = vmatprep.subr.mxu0 0.0
    %1013 = vmatpush1.msra.mxu0 0.0
    %1014 = vmatprep.subr.mxu0 0.0
    %1015 = vmatpush1.msra.mxu0 0.0
    %1016 = vmatprep.subr.mxu0 0.0
    %1017 = vmatpush1.msra.mxu0 0.0
    %1018 = vmatprep.subr.mxu0 0.0
    %1019 = vmatpush1.msra.mxu0 0.0
    %1020 = vmatprep.subr.mxu0 0.0
    %1021 = vmatpush1.msra.mxu0 0.0
    %1022 = vmatprep.subr.mxu0 0.0
    %1023 = vmatpush1.msra.mxu0 0.0
    %1024 = vmatprep.subr.mxu0 0.0
    %1025 = vmatpush1.msra.mxu0 0.0
    %1026 = vmatprep.subr.mxu0 0.0
    %1027 = vmatpush1.msra.mxu0 0.0
    %1028 = vmatprep.subr.mxu0 0.0
    %1029 = vmatpush1.msra.mxu0 0.0
    %1030 = vmatprep.subr.mxu0 0.0
    %1031 = vmatpush1.msra.mxu0 0.0
    %1032 = vmatprep.subr.mxu0 0.0
    %1033 = vmatpush1.msra.mxu0 0.0
    %1034 = vmatprep.mubr.f32.mxu0 0.0
    %1035 = vmatmul.mubr.f32.gmra.mrb[0].mxu0 %v956
    %v1036 = vpop.f32.mrb[0].mxu0
    %v1037 = vadd.f32 0.0, %v1036
    %v1038 = vpop.f32.mrb[0].mxu0
    %1039 = vmatprep.mubr.f32.mxu0 0.0
    %1040 = vmatmul.mubr.f32.gmra.mrb[0].mxu0 %v959
    %v1041 = vpop.f32.mrb[0].mxu0
    %v1042 = vadd.f32 0.0, %v1041
    %v1043 = vpop.f32.mrb[0].mxu0
    %1044 = vmatprep.mubr.f32.mxu0 0.0
    %1045 = vmatmul.mubr.f32.gmra.mrb[0].mxu0 %v962
    %v1046 = vpop.f32.mrb[0].mxu0
    %v1047 = vadd.f32 0.0, %v1046
    %v1048 = vpop.f32.mrb[0].mxu0
    %1049 = vmatprep.mubr.f32.mxu0 0.0
    %1050 = vmatmul.mubr.f32.gmra.mrb[0].mxu0 %v965
    %v1051 = vpop.f32.mrb[0].mxu0
    %v1052 = vadd.f32 0.0, %v1051
    %v1053 = vpop.f32.mrb[0].mxu0
    %1054 = vmatprep.mubr.f32.mxu0 0.0
    %1055 = vmatmul.mubr.f32.gmra.mrb[0].mxu0 %v968
    %v1056 = vpop.f32.mrb[0].mxu0
    %v1057 = vadd.f32 0.0, %v1056
    %v1058 = vpop.f32.mrb[0].mxu0
    %1059 = vdwg.mxu0
    %v1061 = vsel %vm400, %v1057, 0
    %1063 = vmatprep.subr.mxu0 0.0
    %1064 = vmatpush1.msra.mxu0 %v1037
    %1065 = vmatprep.subr.mxu0 0.0
    %1066 = vmatpush1.msra.mxu0 %v1042
    %1067 = vmatprep.subr.mxu0 0.0
    %1068 = vmatpush1.msra.mxu0 %v1047
    %1069 = vmatprep.subr.mxu0 0.0
    %1070 = vmatpush1.msra.mxu0 %v1052
    %1071 = vmatprep.subr.mxu0 0.0
    %1072 = vmatpush1.msra.mxu0 %v1061
    %1073 = vmatprep.subr.mxu0 0.0
    %1074 = vmatpush1.msra.mxu0 0.0
    %1075 = vmatprep.subr.mxu0 0.0
    %1076 = vmatpush1.msra.mxu0 0.0
    %1077 = vmatprep.subr.mxu0 0.0
    %1078 = vmatpush1.msra.mxu0 0.0
    %1079 = vmatprep.subr.mxu0 0.0
    %1080 = vmatpush1.msra.mxu0 0.0
    %1081 = vmatprep.subr.mxu0 0.0
    %1082 = vmatpush1.msra.mxu0 0.0
    %1083 = vmatprep.subr.mxu0 0.0
    %1084 = vmatpush1.msra.mxu0 0.0
    %1085 = vmatprep.subr.mxu0 0.0
    %1086 = vmatpush1.msra.mxu0 0.0
    %1087 = vmatprep.subr.mxu0 0.0
    %1088 = vmatpush1.msra.mxu0 0.0
    %1089 = vmatprep.subr.mxu0 0.0
    %1090 = vmatpush1.msra.mxu0 0.0
    %1091 = vmatprep.subr.mxu0 0.0
    %1092 = vmatpush1.msra.mxu0 0.0
    %1093 = vmatprep.subr.mxu0 0.0
    %1094 = vmatpush1.msra.mxu0 0.0
    %1095 = vmatprep.subr.mxu0 0.0
    %1096 = vmatpush1.msra.mxu0 0.0
    %1097 = vmatprep.subr.mxu0 0.0
    %1098 = vmatpush1.msra.mxu0 0.0
    %1099 = vmatprep.subr.mxu0 0.0
    %1100 = vmatpush1.msra.mxu0 0.0
    %1101 = vmatprep.subr.mxu0 0.0
    %1102 = vmatpush1.msra.mxu0 0.0
    %1103 = vmatprep.subr.mxu0 0.0
    %1104 = vmatpush1.msra.mxu0 0.0
    %1105 = vmatprep.subr.mxu0 0.0
    %1106 = vmatpush1.msra.mxu0 0.0
    %1107 = vmatprep.subr.mxu0 0.0
    %1108 = vmatpush1.msra.mxu0 0.0
    %1109 = vmatprep.subr.mxu0 0.0
    %1110 = vmatpush1.msra.mxu0 0.0
    %1111 = vmatprep.subr.mxu0 0.0
    %1112 = vmatpush1.msra.mxu0 0.0
    %1113 = vmatprep.subr.mxu0 0.0
    %1114 = vmatpush1.msra.mxu0 0.0
    %1115 = vmatprep.subr.mxu0 0.0
    %1116 = vmatpush1.msra.mxu0 0.0
    %1117 = vmatprep.subr.mxu0 0.0
    %1118 = vmatpush1.msra.mxu0 0.0
    %1119 = vmatprep.subr.mxu0 0.0
    %1120 = vmatpush1.msra.mxu0 0.0
    %1121 = vmatprep.subr.mxu0 0.0
    %1122 = vmatpush1.msra.mxu0 0.0
    %1123 = vmatprep.subr.mxu0 0.0
    %1124 = vmatpush1.msra.mxu0 0.0
    %1125 = vmatprep.subr.mxu0 0.0
    %1126 = vmatpush1.msra.mxu0 0.0
    %1127 = vmatprep.mubr.f32.mxu0 0.0
    %1128 = vmatmul.mubr.f32.gmra.mrb[0].mxu0 %v386
    %v1129 = vpop.f32.mrb[0].mxu0
    %v1130 = vadd.f32 0.0, %v1129
    %v1131 = vpop.f32.mrb[0].mxu0
    %1132 = vmatprep.mubr.f32.mxu0 0.0
    %1133 = vmatmul.mubr.f32.gmra.mrb[0].mxu0 %v389
    %v1134 = vpop.f32.mrb[0].mxu0
    %v1135 = vadd.f32 0.0, %v1134
    %v1136 = vpop.f32.mrb[0].mxu0
    %1137 = vmatprep.mubr.f32.mxu0 0.0
    %1138 = vmatmul.mubr.f32.gmra.mrb[0].mxu0 %v392
    %v1139 = vpop.f32.mrb[0].mxu0
    %v1140 = vadd.f32 0.0, %v1139
    %v1141 = vpop.f32.mrb[0].mxu0
    %1142 = vmatprep.mubr.f32.mxu0 0.0
    %1143 = vmatmul.mubr.f32.gmra.mrb[0].mxu0 %v395
    %v1144 = vpop.f32.mrb[0].mxu0
    %v1145 = vadd.f32 0.0, %v1144
    %v1146 = vpop.f32.mrb[0].mxu0
    %1147 = vmatprep.mubr.f32.mxu0 0.0
    %1148 = vmatmul.mubr.f32.gmra.mrb[0].mxu0 %v398
    %v1149 = vpop.f32.mrb[0].mxu0
    %v1150 = vadd.f32 0.0, %v1149
    %v1151 = vpop.f32.mrb[0].mxu0
    %1152 = vdwg.mxu0
    %v1153 = vld [vmem:[%s12] sm:$0xff]
    %v1154 = vld [vmem:[%s12 + $0x8] sm:$0xff]
    %v1155 = vld [vmem:[%s12 + $0x10] sm:$0xff]
    %v1156 = vld [vmem:[%s12 + $0x18] sm:$0xff]
    %v1157 = vld [vmem:[%s12 + $0x20] sm:$0x3]
    %v1158 = vmul.f32 %v1130, %v1153
    %v1159 = vmul.f32 %v1135, %v1154
    %v1160 = vmul.f32 %v1140, %v1155
    %v1161 = vmul.f32 %v1145, %v1156
    %v1162 = vmul.f32 %v1150, %v1157
    %v1163 = vld [vmem:[#allocation15] sm:$0xff]
    %v1164 = vld [vmem:[#allocation15 + $0x8] sm:$0xff]
    %v1165 = vld [vmem:[#allocation15 + $0x10] sm:$0xff]
    %v1166 = vld [vmem:[#allocation15 + $0x18] sm:$0xff]
    %v1167 = vld [vmem:[#allocation15 + $0x20] sm:$0x3]
    %v1168 = vadd.f32 %v1158, %v1163
    %v1169 = vadd.f32 %v1159, %v1164
    %v1170 = vadd.f32 %v1160, %v1165
    %v1171 = vadd.f32 %v1161, %v1166
    %v1172 = vadd.f32 %v1162, %v1167
    %v1173 = vmax.f32 %v1168, 0.0
    %v1174 = vmax.f32 %v1169, 0.0
    %v1175 = vmax.f32 %v1170, 0.0
    %v1176 = vmax.f32 %v1171, 0.0
    %v1177 = vmax.f32 %v1172, 0.0
    %v1178 = vadd.f32 %v1173, %v735
    %v1179 = vadd.f32 %v1174, %v736
    %v1180 = vadd.f32 %v1175, %v737
    %v1181 = vadd.f32 %v1176, %v738
    %v1182 = vadd.f32 %v1177, %v739
    %v1183 = vld [vmem:[#allocation16] sm:$0xff]
    %v1184 = vld [vmem:[#allocation16 + $0x8] sm:$0xff]
    %v1185 = vld [vmem:[#allocation16 + $0x10] sm:$0xff]
    %v1186 = vld [vmem:[#allocation16 + $0x18] sm:$0xff]
    %v1188 = vsel %vm954, %v1178, 0
    %v1191 = vsel %vm954, %v1179, 0
    %v1194 = vsel %vm954, %v1180, 0
    %v1197 = vsel %vm954, %v1181, 0
    %v1200 = vsel %vm954, %v1182, 0
    %1202 = vmatprep.subr.mxu0 0.0
    %1203 = vmatpush1.msra.mxu0 %v1183
    %1204 = vmatprep.subr.mxu0 0.0
    %1205 = vmatpush1.msra.mxu0 %v1184
    %1206 = vmatprep.subr.mxu0 0.0
    %1207 = vmatpush1.msra.mxu0 %v1185
    %1208 = vmatprep.subr.mxu0 0.0
    %1209 = vmatpush1.msra.mxu0 %v1186
    %1210 = vmatprep.subr.mxu0 0.0
    %1211 = vmatpush1.msra.mxu0 0.0
    %1212 = vmatprep.subr.mxu0 0.0
    %1213 = vmatpush1.msra.mxu0 0.0
    %1214 = vmatprep.subr.mxu0 0.0
    %1215 = vmatpush1.msra.mxu0 0.0
    %1216 = vmatprep.subr.mxu0 0.0
    %1217 = vmatpush1.msra.mxu0 0.0
    %1218 = vmatprep.subr.mxu0 0.0
    %1219 = vmatpush1.msra.mxu0 0.0
    %1220 = vmatprep.subr.mxu0 0.0
    %1221 = vmatpush1.msra.mxu0 0.0
    %1222 = vmatprep.subr.mxu0 0.0
    %1223 = vmatpush1.msra.mxu0 0.0
    %1224 = vmatprep.subr.mxu0 0.0
    %1225 = vmatpush1.msra.mxu0 0.0
    %1226 = vmatprep.subr.mxu0 0.0
    %1227 = vmatpush1.msra.mxu0 0.0
    %1228 = vmatprep.subr.mxu0 0.0
    %1229 = vmatpush1.msra.mxu0 0.0
    %1230 = vmatprep.subr.mxu0 0.0
    %1231 = vmatpush1.msra.mxu0 0.0
    %1232 = vmatprep.subr.mxu0 0.0
    %1233 = vmatpush1.msra.mxu0 0.0
    %1234 = vmatprep.subr.mxu0 0.0
    %1235 = vmatpush1.msra.mxu0 0.0
    %1236 = vmatprep.subr.mxu0 0.0
    %1237 = vmatpush1.msra.mxu0 0.0
    %1238 = vmatprep.subr.mxu0 0.0
    %1239 = vmatpush1.msra.mxu0 0.0
    %1240 = vmatprep.subr.mxu0 0.0
    %1241 = vmatpush1.msra.mxu0 0.0
    %1242 = vmatprep.subr.mxu0 0.0
    %1243 = vmatpush1.msra.mxu0 0.0
    %1244 = vmatprep.subr.mxu0 0.0
    %1245 = vmatpush1.msra.mxu0 0.0
    %1246 = vmatprep.subr.mxu0 0.0
    %1247 = vmatpush1.msra.mxu0 0.0
    %1248 = vmatprep.subr.mxu0 0.0
    %1249 = vmatpush1.msra.mxu0 0.0
    %1250 = vmatprep.subr.mxu0 0.0
    %1251 = vmatpush1.msra.mxu0 0.0
    %1252 = vmatprep.subr.mxu0 0.0
    %1253 = vmatpush1.msra.mxu0 0.0
    %1254 = vmatprep.subr.mxu0 0.0
    %1255 = vmatpush1.msra.mxu0 0.0
    %1256 = vmatprep.subr.mxu0 0.0
    %1257 = vmatpush1.msra.mxu0 0.0
    %1258 = vmatprep.subr.mxu0 0.0
    %1259 = vmatpush1.msra.mxu0 0.0
    %1260 = vmatprep.subr.mxu0 0.0
    %1261 = vmatpush1.msra.mxu0 0.0
    %1262 = vmatprep.subr.mxu0 0.0
    %1263 = vmatpush1.msra.mxu0 0.0
    %1264 = vmatprep.subr.mxu0 0.0
    %1265 = vmatpush1.msra.mxu0 0.0
    %1266 = vmatprep.mubr.f32.mxu0 0.0
    %1267 = vmatmul.mubr.f32.gmra.mrb[0].mxu0 %v1188
    %v1268 = vpop.f32.mrb[0].mxu0
    %v1269 = vadd.f32 0.0, %v1268
    %v1270 = vpop.f32.mrb[0].mxu0
    %1271 = vmatprep.mubr.f32.mxu0 0.0
    %1272 = vmatmul.mubr.f32.gmra.mrb[0].mxu0 %v1191
    %v1273 = vpop.f32.mrb[0].mxu0
    %v1274 = vadd.f32 0.0, %v1273
    %v1275 = vpop.f32.mrb[0].mxu0
    %1276 = vmatprep.mubr.f32.mxu0 0.0
    %1277 = vmatmul.mubr.f32.gmra.mrb[0].mxu0 %v1194
    %v1278 = vpop.f32.mrb[0].mxu0
    %v1279 = vadd.f32 0.0, %v1278
    %v1280 = vpop.f32.mrb[0].mxu0
    %1281 = vmatprep.mubr.f32.mxu0 0.0
    %1282 = vmatmul.mubr.f32.gmra.mrb[0].mxu0 %v1197
    %v1283 = vpop.f32.mrb[0].mxu0
    %v1284 = vadd.f32 0.0, %v1283
    %v1285 = vpop.f32.mrb[0].mxu0
    %1286 = vmatprep.mubr.f32.mxu0 0.0
    %1287 = vmatmul.mubr.f32.gmra.mrb[0].mxu0 %v1200
    %v1288 = vpop.f32.mrb[0].mxu0
    %v1289 = vadd.f32 0.0, %v1288
    %v1290 = vpop.f32.mrb[0].mxu0
    %1291 = vdwg.mxu0
    %v1293 = vsel %vm400, %v1289, 0
    %1295 = vmatprep.subr.mxu0 0.0
    %1296 = vmatpush1.msra.mxu0 %v1269
    %1297 = vmatprep.subr.mxu0 0.0
    %1298 = vmatpush1.msra.mxu0 %v1274
    %1299 = vmatprep.subr.mxu0 0.0
    %1300 = vmatpush1.msra.mxu0 %v1279
    %1301 = vmatprep.subr.mxu0 0.0
    %1302 = vmatpush1.msra.mxu0 %v1284
    %1303 = vmatprep.subr.mxu0 0.0
    %1304 = vmatpush1.msra.mxu0 %v1293
    %1305 = vmatprep.subr.mxu0 0.0
    %1306 = vmatpush1.msra.mxu0 0.0
    %1307 = vmatprep.subr.mxu0 0.0
    %1308 = vmatpush1.msra.mxu0 0.0
    %1309 = vmatprep.subr.mxu0 0.0
    %1310 = vmatpush1.msra.mxu0 0.0
    %1311 = vmatprep.subr.mxu0 0.0
    %1312 = vmatpush1.msra.mxu0 0.0
    %1313 = vmatprep.subr.mxu0 0.0
    %1314 = vmatpush1.msra.mxu0 0.0
    %1315 = vmatprep.subr.mxu0 0.0
    %1316 = vmatpush1.msra.mxu0 0.0
    %1317 = vmatprep.subr.mxu0 0.0
    %1318 = vmatpush1.msra.mxu0 0.0
    %1319 = vmatprep.subr.mxu0 0.0
    %1320 = vmatpush1.msra.mxu0 0.0
    %1321 = vmatprep.subr.mxu0 0.0
    %1322 = vmatpush1.msra.mxu0 0.0
    %1323 = vmatprep.subr.mxu0 0.0
    %1324 = vmatpush1.msra.mxu0 0.0
    %1325 = vmatprep.subr.mxu0 0.0
    %1326 = vmatpush1.msra.mxu0 0.0
    %1327 = vmatprep.subr.mxu0 0.0
    %1328 = vmatpush1.msra.mxu0 0.0
    %1329 = vmatprep.subr.mxu0 0.0
    %1330 = vmatpush1.msra.mxu0 0.0
    %1331 = vmatprep.subr.mxu0 0.0
    %1332 = vmatpush1.msra.mxu0 0.0
    %1333 = vmatprep.subr.mxu0 0.0
    %1334 = vmatpush1.msra.mxu0 0.0
    %1335 = vmatprep.subr.mxu0 0.0
    %1336 = vmatpush1.msra.mxu0 0.0
    %1337 = vmatprep.subr.mxu0 0.0
    %1338 = vmatpush1.msra.mxu0 0.0
    %1339 = vmatprep.subr.mxu0 0.0
    %1340 = vmatpush1.msra.mxu0 0.0
    %1341 = vmatprep.subr.mxu0 0.0
    %1342 = vmatpush1.msra.mxu0 0.0
    %1343 = vmatprep.subr.mxu0 0.0
    %1344 = vmatpush1.msra.mxu0 0.0
    %1345 = vmatprep.subr.mxu0 0.0
    %1346 = vmatpush1.msra.mxu0 0.0
    %1347 = vmatprep.subr.mxu0 0.0
    %1348 = vmatpush1.msra.mxu0 0.0
    %1349 = vmatprep.subr.mxu0 0.0
    %1350 = vmatpush1.msra.mxu0 0.0
    %1351 = vmatprep.subr.mxu0 0.0
    %1352 = vmatpush1.msra.mxu0 0.0
    %1353 = vmatprep.subr.mxu0 0.0
    %1354 = vmatpush1.msra.mxu0 0.0
    %1355 = vmatprep.subr.mxu0 0.0
    %1356 = vmatpush1.msra.mxu0 0.0
    %1357 = vmatprep.subr.mxu0 0.0
    %1358 = vmatpush1.msra.mxu0 0.0
    %1359 = vmatprep.mubr.f32.mxu0 0.0
    %1360 = vmatmul.mubr.f32.gmra.mrb[0].mxu0 %v386
    %v1361 = vpop.f32.mrb[0].mxu0
    %v1362 = vadd.f32 0.0, %v1361
    %v1363 = vpop.f32.mrb[0].mxu0
    %1364 = vmatprep.mubr.f32.mxu0 0.0
    %1365 = vmatmul.mubr.f32.gmra.mrb[0].mxu0 %v389
    %v1366 = vpop.f32.mrb[0].mxu0
    %v1367 = vadd.f32 0.0, %v1366
    %v1368 = vpop.f32.mrb[0].mxu0
    %1369 = vmatprep.mubr.f32.mxu0 0.0
    %1370 = vmatmul.mubr.f32.gmra.mrb[0].mxu0 %v392
    %v1371 = vpop.f32.mrb[0].mxu0
    %v1372 = vadd.f32 0.0, %v1371
    %v1373 = vpop.f32.mrb[0].mxu0
    %1374 = vmatprep.mubr.f32.mxu0 0.0
    %1375 = vmatmul.mubr.f32.gmra.mrb[0].mxu0 %v395
    %v1376 = vpop.f32.mrb[0].mxu0
    %v1377 = vadd.f32 0.0, %v1376
    %v1378 = vpop.f32.mrb[0].mxu0
    %1379 = vmatprep.mubr.f32.mxu0 0.0
    %1380 = vmatmul.mubr.f32.gmra.mrb[0].mxu0 %v398
    %v1381 = vpop.f32.mrb[0].mxu0
    %v1382 = vadd.f32 0.0, %v1381
    %v1383 = vpop.f32.mrb[0].mxu0
    %1384 = vdwg.mxu0
    %v1385 = vld [vmem:[%s15] sm:$0xff]
    %v1386 = vld [vmem:[%s15 + $0x8] sm:$0xff]
    %v1387 = vld [vmem:[%s15 + $0x10] sm:$0xff]
    %v1388 = vld [vmem:[%s15 + $0x18] sm:$0xff]
    %v1389 = vld [vmem:[%s15 + $0x20] sm:$0x3]
    %v1390 = vmul.f32 %v1362, %v1385
    %v1391 = vmul.f32 %v1367, %v1386
    %v1392 = vmul.f32 %v1372, %v1387
    %v1393 = vmul.f32 %v1377, %v1388
    %v1394 = vmul.f32 %v1382, %v1389
    %v1395 = vld [vmem:[%s16] sm:$0xff]
    %v1396 = vld [vmem:[%s16 + $0x8] sm:$0xff]
    %v1397 = vld [vmem:[%s16 + $0x10] sm:$0xff]
    %v1398 = vld [vmem:[%s16 + $0x18] sm:$0xff]
    %v1399 = vld [vmem:[%s16 + $0x20] sm:$0x3]
    %v1400 = vadd.f32 %v1390, %v1395
    %v1401 = vadd.f32 %v1391, %v1396
    %v1402 = vadd.f32 %v1392, %v1397
    %v1403 = vadd.f32 %v1393, %v1398
    %v1404 = vadd.f32 %v1394, %v1399
    %v1405 = vmax.f32 %v1400, 0.0
    %v1406 = vmax.f32 %v1401, 0.0
    %v1407 = vmax.f32 %v1402, 0.0
    %v1408 = vmax.f32 %v1403, 0.0
    %v1409 = vmax.f32 %v1404, 0.0
    %v1410 = vld [vmem:[#allocation18] sm:$0xff]
    %v1411 = vld [vmem:[#allocation18 + $0x8] sm:$0xff]
    %v1412 = vld [vmem:[#allocation18 + $0x10] sm:$0xff]
    %v1413 = vld [vmem:[#allocation18 + $0x18] sm:$0xff]
    %v1415 = vsel %vm954, %v1405, 0
    %v1418 = vsel %vm954, %v1406, 0
    %v1421 = vsel %vm954, %v1407, 0
    %v1424 = vsel %vm954, %v1408, 0
    %v1427 = vsel %vm954, %v1409, 0
    %1429 = vmatprep.subr.mxu0 0.0
    %1430 = vmatpush1.msra.mxu0 %v1410
    %1431 = vmatprep.subr.mxu0 0.0
    %1432 = vmatpush1.msra.mxu0 %v1411
    %1433 = vmatprep.subr.mxu0 0.0
    %1434 = vmatpush1.msra.mxu0 %v1412
    %1435 = vmatprep.subr.mxu0 0.0
    %1436 = vmatpush1.msra.mxu0 %v1413
    %1437 = vmatprep.subr.mxu0 0.0
    %1438 = vmatpush1.msra.mxu0 0.0
    %1439 = vmatprep.subr.mxu0 0.0
    %1440 = vmatpush1.msra.mxu0 0.0
    %1441 = vmatprep.subr.mxu0 0.0
    %1442 = vmatpush1.msra.mxu0 0.0
    %1443 = vmatprep.subr.mxu0 0.0
    %1444 = vmatpush1.msra.mxu0 0.0
    %1445 = vmatprep.subr.mxu0 0.0
    %1446 = vmatpush1.msra.mxu0 0.0
    %1447 = vmatprep.subr.mxu0 0.0
    %1448 = vmatpush1.msra.mxu0 0.0
    %1449 = vmatprep.subr.mxu0 0.0
    %1450 = vmatpush1.msra.mxu0 0.0
    %1451 = vmatprep.subr.mxu0 0.0
    %1452 = vmatpush1.msra.mxu0 0.0
    %1453 = vmatprep.subr.mxu0 0.0
    %1454 = vmatpush1.msra.mxu0 0.0
    %1455 = vmatprep.subr.mxu0 0.0
    %1456 = vmatpush1.msra.mxu0 0.0
    %1457 = vmatprep.subr.mxu0 0.0
    %1458 = vmatpush1.msra.mxu0 0.0
    %1459 = vmatprep.subr.mxu0 0.0
    %1460 = vmatpush1.msra.mxu0 0.0
    %1461 = vmatprep.subr.mxu0 0.0
    %1462 = vmatpush1.msra.mxu0 0.0
    %1463 = vmatprep.subr.mxu0 0.0
    %1464 = vmatpush1.msra.mxu0 0.0
    %1465 = vmatprep.subr.mxu0 0.0
    %1466 = vmatpush1.msra.mxu0 0.0
    %1467 = vmatprep.subr.mxu0 0.0
    %1468 = vmatpush1.msra.mxu0 0.0
    %1469 = vmatprep.subr.mxu0 0.0
    %1470 = vmatpush1.msra.mxu0 0.0
    %1471 = vmatprep.subr.mxu0 0.0
    %1472 = vmatpush1.msra.mxu0 0.0
    %1473 = vmatprep.subr.mxu0 0.0
    %1474 = vmatpush1.msra.mxu0 0.0
    %1475 = vmatprep.subr.mxu0 0.0
    %1476 = vmatpush1.msra.mxu0 0.0
    %1477 = vmatprep.subr.mxu0 0.0
    %1478 = vmatpush1.msra.mxu0 0.0
    %1479 = vmatprep.subr.mxu0 0.0
    %1480 = vmatpush1.msra.mxu0 0.0
    %1481 = vmatprep.subr.mxu0 0.0
    %1482 = vmatpush1.msra.mxu0 0.0
    %1483 = vmatprep.subr.mxu0 0.0
    %1484 = vmatpush1.msra.mxu0 0.0
    %1485 = vmatprep.subr.mxu0 0.0
    %1486 = vmatpush1.msra.mxu0 0.0
    %1487 = vmatprep.subr.mxu0 0.0
    %1488 = vmatpush1.msra.mxu0 0.0
    %1489 = vmatprep.subr.mxu0 0.0
    %1490 = vmatpush1.msra.mxu0 0.0
    %1491 = vmatprep.subr.mxu0 0.0
    %1492 = vmatpush1.msra.mxu0 0.0
    %1493 = vmatprep.mubr.f32.mxu0 0.0
    %1494 = vmatmul.mubr.f32.gmra.mrb[0].mxu0 %v1415
    %v1495 = vpop.f32.mrb[0].mxu0
    %v1496 = vadd.f32 0.0, %v1495
    %v1497 = vpop.f32.mrb[0].mxu0
    %1498 = vmatprep.mubr.f32.mxu0 0.0
    %1499 = vmatmul.mubr.f32.gmra.mrb[0].mxu0 %v1418
    %v1500 = vpop.f32.mrb[0].mxu0
    %v1501 = vadd.f32 0.0, %v1500
    %v1502 = vpop.f32.mrb[0].mxu0
    %1503 = vmatprep.mubr.f32.mxu0 0.0
    %1504 = vmatmul.mubr.f32.gmra.mrb[0].mxu0 %v1421
    %v1505 = vpop.f32.mrb[0].mxu0
    %v1506 = vadd.f32 0.0, %v1505
    %v1507 = vpop.f32.mrb[0].mxu0
    %1508 = vmatprep.mubr.f32.mxu0 0.0
    %1509 = vmatmul.mubr.f32.gmra.mrb[0].mxu0 %v1424
    %v1510 = vpop.f32.mrb[0].mxu0
    %v1511 = vadd.f32 0.0, %v1510
    %v1512 = vpop.f32.mrb[0].mxu0
    %1513 = vmatprep.mubr.f32.mxu0 0.0
    %1514 = vmatmul.mubr.f32.gmra.mrb[0].mxu0 %v1427
    %v1515 = vpop.f32.mrb[0].mxu0
    %v1516 = vadd.f32 0.0, %v1515
    %v1517 = vpop.f32.mrb[0].mxu0
    %1518 = vdwg.mxu0
    %v1520 = vsel %vm400, %v1516, 0
    %1522 = vmatprep.subr.mxu0 0.0
    %1523 = vmatpush1.msra.mxu0 %v1496
    %1524 = vmatprep.subr.mxu0 0.0
    %1525 = vmatpush1.msra.mxu0 %v1501
    %1526 = vmatprep.subr.mxu0 0.0
    %1527 = vmatpush1.msra.mxu0 %v1506
    %1528 = vmatprep.subr.mxu0 0.0
    %1529 = vmatpush1.msra.mxu0 %v1511
    %1530 = vmatprep.subr.mxu0 0.0
    %1531 = vmatpush1.msra.mxu0 %v1520
    %1532 = vmatprep.subr.mxu0 0.0
    %1533 = vmatpush1.msra.mxu0 0.0
    %1534 = vmatprep.subr.mxu0 0.0
    %1535 = vmatpush1.msra.mxu0 0.0
    %1536 = vmatprep.subr.mxu0 0.0
    %1537 = vmatpush1.msra.mxu0 0.0
    %1538 = vmatprep.subr.mxu0 0.0
    %1539 = vmatpush1.msra.mxu0 0.0
    %1540 = vmatprep.subr.mxu0 0.0
    %1541 = vmatpush1.msra.mxu0 0.0
    %1542 = vmatprep.subr.mxu0 0.0
    %1543 = vmatpush1.msra.mxu0 0.0
    %1544 = vmatprep.subr.mxu0 0.0
    %1545 = vmatpush1.msra.mxu0 0.0
    %1546 = vmatprep.subr.mxu0 0.0
    %1547 = vmatpush1.msra.mxu0 0.0
    %1548 = vmatprep.subr.mxu0 0.0
    %1549 = vmatpush1.msra.mxu0 0.0
    %1550 = vmatprep.subr.mxu0 0.0
    %1551 = vmatpush1.msra.mxu0 0.0
    %1552 = vmatprep.subr.mxu0 0.0
    %1553 = vmatpush1.msra.mxu0 0.0
    %1554 = vmatprep.subr.mxu0 0.0
    %1555 = vmatpush1.msra.mxu0 0.0
    %1556 = vmatprep.subr.mxu0 0.0
    %1557 = vmatpush1.msra.mxu0 0.0
    %1558 = vmatprep.subr.mxu0 0.0
    %1559 = vmatpush1.msra.mxu0 0.0
    %1560 = vmatprep.subr.mxu0 0.0
    %1561 = vmatpush1.msra.mxu0 0.0
    %1562 = vmatprep.subr.mxu0 0.0
    %1563 = vmatpush1.msra.mxu0 0.0
    %1564 = vmatprep.subr.mxu0 0.0
    %1565 = vmatpush1.msra.mxu0 0.0
    %1566 = vmatprep.subr.mxu0 0.0
    %1567 = vmatpush1.msra.mxu0 0.0
    %1568 = vmatprep.subr.mxu0 0.0
    %1569 = vmatpush1.msra.mxu0 0.0
    %1570 = vmatprep.subr.mxu0 0.0
    %1571 = vmatpush1.msra.mxu0 0.0
    %1572 = vmatprep.subr.mxu0 0.0
    %1573 = vmatpush1.msra.mxu0 0.0
    %1574 = vmatprep.subr.mxu0 0.0
    %1575 = vmatpush1.msra.mxu0 0.0
    %1576 = vmatprep.subr.mxu0 0.0
    %1577 = vmatpush1.msra.mxu0 0.0
    %1578 = vmatprep.subr.mxu0 0.0
    %1579 = vmatpush1.msra.mxu0 0.0
    %1580 = vmatprep.subr.mxu0 0.0
    %1581 = vmatpush1.msra.mxu0 0.0
    %1582 = vmatprep.subr.mxu0 0.0
    %1583 = vmatpush1.msra.mxu0 0.0
    %1584 = vmatprep.subr.mxu0 0.0
    %1585 = vmatpush1.msra.mxu0 0.0
    %1586 = vmatprep.mubr.f32.mxu0 0.0
    %1587 = vmatmul.mubr.f32.gmra.mrb[0].mxu0 %v386
    %v1588 = vpop.f32.mrb[0].mxu0
    %v1589 = vadd.f32 0.0, %v1588
    %v1590 = vpop.f32.mrb[0].mxu0
    %1591 = vmatprep.mubr.f32.mxu0 0.0
    %1592 = vmatmul.mubr.f32.gmra.mrb[0].mxu0 %v389
    %v1593 = vpop.f32.mrb[0].mxu0
    %v1594 = vadd.f32 0.0, %v1593
    %v1595 = vpop.f32.mrb[0].mxu0
    %1596 = vmatprep.mubr.f32.mxu0 0.0
    %1597 = vmatmul.mubr.f32.gmra.mrb[0].mxu0 %v392
    %v1598 = vpop.f32.mrb[0].mxu0
    %v1599 = vadd.f32 0.0, %v1598
    %v1600 = vpop.f32.mrb[0].mxu0
    %1601 = vmatprep.mubr.f32.mxu0 0.0
    %1602 = vmatmul.mubr.f32.gmra.mrb[0].mxu0 %v395
    %v1603 = vpop.f32.mrb[0].mxu0
    %v1604 = vadd.f32 0.0, %v1603
    %v1605 = vpop.f32.mrb[0].mxu0
    %1606 = vmatprep.mubr.f32.mxu0 0.0
    %1607 = vmatmul.mubr.f32.gmra.mrb[0].mxu0 %v398
    %v1608 = vpop.f32.mrb[0].mxu0
    %v1609 = vadd.f32 0.0, %v1608
    %v1610 = vpop.f32.mrb[0].mxu0
    %1611 = vdwg.mxu0
    %v1612 = vld [vmem:[%s18] sm:$0xff]
    %v1613 = vld [vmem:[%s18 + $0x8] sm:$0xff]
    %v1614 = vld [vmem:[%s18 + $0x10] sm:$0xff]
    %v1615 = vld [vmem:[%s18 + $0x18] sm:$0xff]
    %v1616 = vld [vmem:[%s18 + $0x20] sm:$0x3]
    %v1617 = vmul.f32 %v1589, %v1612
    %v1618 = vmul.f32 %v1594, %v1613
    %v1619 = vmul.f32 %v1599, %v1614
    %v1620 = vmul.f32 %v1604, %v1615
    %v1621 = vmul.f32 %v1609, %v1616
    %v1622 = vld [vmem:[%s19] sm:$0xff]
    %v1623 = vld [vmem:[%s19 + $0x8] sm:$0xff]
    %v1624 = vld [vmem:[%s19 + $0x10] sm:$0xff]
    %v1625 = vld [vmem:[%s19 + $0x18] sm:$0xff]
    %v1626 = vld [vmem:[%s19 + $0x20] sm:$0x3]
    %v1627 = vadd.f32 %v1617, %v1622
    %v1628 = vadd.f32 %v1618, %v1623
    %v1629 = vadd.f32 %v1619, %v1624
    %v1630 = vadd.f32 %v1620, %v1625
    %v1631 = vadd.f32 %v1621, %v1626
    %v1632 = vmax.f32 %v1627, 0.0
    %v1633 = vmax.f32 %v1628, 0.0
    %v1634 = vmax.f32 %v1629, 0.0
    %v1635 = vmax.f32 %v1630, 0.0
    %v1636 = vmax.f32 %v1631, 0.0
    %v1637 = vadd.f32 %v1632, %v1178
    %v1638 = vadd.f32 %v1633, %v1179
    %v1639 = vadd.f32 %v1634, %v1180
    %v1640 = vadd.f32 %v1635, %v1181
    %v1641 = vadd.f32 %v1636, %v1182
    %v1642 = vld [vmem:[#allocation19] sm:$0xff]
    %v1643 = vld [vmem:[#allocation19 + $0x8] sm:$0xff]
    %v1644 = vld [vmem:[#allocation19 + $0x10] sm:$0xff]
    %v1645 = vld [vmem:[#allocation19 + $0x18] sm:$0xff]
    %v1647 = vsel %vm954, %v1637, 0
    %v1650 = vsel %vm954, %v1638, 0
    %v1653 = vsel %vm954, %v1639, 0
    %v1656 = vsel %vm954, %v1640, 0
    %v1659 = vsel %vm954, %v1641, 0
    %1661 = vmatprep.subr.mxu0 0.0
    %1662 = vmatpush1.msra.mxu0 %v1642
    %1663 = vmatprep.subr.mxu0 0.0
    %1664 = vmatpush1.msra.mxu0 %v1643
    %1665 = vmatprep.subr.mxu0 0.0
    %1666 = vmatpush1.msra.mxu0 %v1644
    %1667 = vmatprep.subr.mxu0 0.0
    %1668 = vmatpush1.msra.mxu0 %v1645
    %1669 = vmatprep.subr.mxu0 0.0
    %1670 = vmatpush1.msra.mxu0 0.0
    %1671 = vmatprep.subr.mxu0 0.0
    %1672 = vmatpush1.msra.mxu0 0.0
    %1673 = vmatprep.subr.mxu0 0.0
    %1674 = vmatpush1.msra.mxu0 0.0
    %1675 = vmatprep.subr.mxu0 0.0
    %1676 = vmatpush1.msra.mxu0 0.0
    %1677 = vmatprep.subr.mxu0 0.0
    %1678 = vmatpush1.msra.mxu0 0.0
    %1679 = vmatprep.subr.mxu0 0.0
    %1680 = vmatpush1.msra.mxu0 0.0
    %1681 = vmatprep.subr.mxu0 0.0
    %1682 = vmatpush1.msra.mxu0 0.0
    %1683 = vmatprep.subr.mxu0 0.0
    %1684 = vmatpush1.msra.mxu0 0.0
    %1685 = vmatprep.subr.mxu0 0.0
    %1686 = vmatpush1.msra.mxu0 0.0
    %1687 = vmatprep.subr.mxu0 0.0
    %1688 = vmatpush1.msra.mxu0 0.0
    %1689 = vmatprep.subr.mxu0 0.0
    %1690 = vmatpush1.msra.mxu0 0.0
    %1691 = vmatprep.subr.mxu0 0.0
    %1692 = vmatpush1.msra.mxu0 0.0
    %1693 = vmatprep.subr.mxu0 0.0
    %1694 = vmatpush1.msra.mxu0 0.0
    %1695 = vmatprep.subr.mxu0 0.0
    %1696 = vmatpush1.msra.mxu0 0.0
    %1697 = vmatprep.subr.mxu0 0.0
    %1698 = vmatpush1.msra.mxu0 0.0
    %1699 = vmatprep.subr.mxu0 0.0
    %1700 = vmatpush1.msra.mxu0 0.0
    %1701 = vmatprep.subr.mxu0 0.0
    %1702 = vmatpush1.msra.mxu0 0.0
    %1703 = vmatprep.subr.mxu0 0.0
    %1704 = vmatpush1.msra.mxu0 0.0
    %1705 = vmatprep.subr.mxu0 0.0
    %1706 = vmatpush1.msra.mxu0 0.0
    %1707 = vmatprep.subr.mxu0 0.0
    %1708 = vmatpush1.msra.mxu0 0.0
    %1709 = vmatprep.subr.mxu0 0.0
    %1710 = vmatpush1.msra.mxu0 0.0
    %1711 = vmatprep.subr.mxu0 0.0
    %1712 = vmatpush1.msra.mxu0 0.0
    %1713 = vmatprep.subr.mxu0 0.0
    %1714 = vmatpush1.msra.mxu0 0.0
    %1715 = vmatprep.subr.mxu0 0.0
    %1716 = vmatpush1.msra.mxu0 0.0
    %1717 = vmatprep.subr.mxu0 0.0
    %1718 = vmatpush1.msra.mxu0 0.0
    %1719 = vmatprep.subr.mxu0 0.0
    %1720 = vmatpush1.msra.mxu0 0.0
    %1721 = vmatprep.subr.mxu0 0.0
    %1722 = vmatpush1.msra.mxu0 0.0
    %1723 = vmatprep.subr.mxu0 0.0
    %1724 = vmatpush1.msra.mxu0 0.0
    %1725 = vmatprep.mubr.f32.mxu0 0.0
    %1726 = vmatmul.mubr.f32.gmra.mrb[0].mxu0 %v1647
    %v1727 = vpop.f32.mrb[0].mxu0
    %v1728 = vadd.f32 0.0, %v1727
    %v1729 = vpop.f32.mrb[0].mxu0
    %1730 = vmatprep.mubr.f32.mxu0 0.0
    %1731 = vmatmul.mubr.f32.gmra.mrb[0].mxu0 %v1650
    %v1732 = vpop.f32.mrb[0].mxu0
    %v1733 = vadd.f32 0.0, %v1732
    %v1734 = vpop.f32.mrb[0].mxu0
    %1735 = vmatprep.mubr.f32.mxu0 0.0
    %1736 = vmatmul.mubr.f32.gmra.mrb[0].mxu0 %v1653
    %v1737 = vpop.f32.mrb[0].mxu0
    %v1738 = vadd.f32 0.0, %v1737
    %v1739 = vpop.f32.mrb[0].mxu0
    %1740 = vmatprep.mubr.f32.mxu0 0.0
    %1741 = vmatmul.mubr.f32.gmra.mrb[0].mxu0 %v1656
    %v1742 = vpop.f32.mrb[0].mxu0
    %v1743 = vadd.f32 0.0, %v1742
    %v1744 = vpop.f32.mrb[0].mxu0
    %1745 = vmatprep.mubr.f32.mxu0 0.0
    %1746 = vmatmul.mubr.f32.gmra.mrb[0].mxu0 %v1659
    %v1747 = vpop.f32.mrb[0].mxu0
    %v1748 = vadd.f32 0.0, %v1747
    %v1749 = vpop.f32.mrb[0].mxu0
    %1750 = vdwg.mxu0
    %v1752 = vsel %vm400, %v1748, 0
    %1754 = vmatprep.subr.mxu0 0.0
    %1755 = vmatpush1.msra.mxu0 %v1728
    %1756 = vmatprep.subr.mxu0 0.0
    %1757 = vmatpush1.msra.mxu0 %v1733
    %1758 = vmatprep.subr.mxu0 0.0
    %1759 = vmatpush1.msra.mxu0 %v1738
    %1760 = vmatprep.subr.mxu0 0.0
    %1761 = vmatpush1.msra.mxu0 %v1743
    %1762 = vmatprep.subr.mxu0 0.0
    %1763 = vmatpush1.msra.mxu0 %v1752
    %1764 = vmatprep.subr.mxu0 0.0
    %1765 = vmatpush1.msra.mxu0 0.0
    %1766 = vmatprep.subr.mxu0 0.0
    %1767 = vmatpush1.msra.mxu0 0.0
    %1768 = vmatprep.subr.mxu0 0.0
    %1769 = vmatpush1.msra.mxu0 0.0
    %1770 = vmatprep.subr.mxu0 0.0
    %1771 = vmatpush1.msra.mxu0 0.0
    %1772 = vmatprep.subr.mxu0 0.0
    %1773 = vmatpush1.msra.mxu0 0.0
    %1774 = vmatprep.subr.mxu0 0.0
    %1775 = vmatpush1.msra.mxu0 0.0
    %1776 = vmatprep.subr.mxu0 0.0
    %1777 = vmatpush1.msra.mxu0 0.0
    %1778 = vmatprep.subr.mxu0 0.0
    %1779 = vmatpush1.msra.mxu0 0.0
    %1780 = vmatprep.subr.mxu0 0.0
    %1781 = vmatpush1.msra.mxu0 0.0
    %1782 = vmatprep.subr.mxu0 0.0
    %1783 = vmatpush1.msra.mxu0 0.0
    %1784 = vmatprep.subr.mxu0 0.0
    %1785 = vmatpush1.msra.mxu0 0.0
    %1786 = vmatprep.subr.mxu0 0.0
    %1787 = vmatpush1.msra.mxu0 0.0
    %1788 = vmatprep.subr.mxu0 0.0
    %1789 = vmatpush1.msra.mxu0 0.0
    %1790 = vmatprep.subr.mxu0 0.0
    %1791 = vmatpush1.msra.mxu0 0.0
    %1792 = vmatprep.subr.mxu0 0.0
    %1793 = vmatpush1.msra.mxu0 0.0
    %1794 = vmatprep.subr.mxu0 0.0
    %1795 = vmatpush1.msra.mxu0 0.0
    %1796 = vmatprep.subr.mxu0 0.0
    %1797 = vmatpush1.msra.mxu0 0.0
    %1798 = vmatprep.subr.mxu0 0.0
    %1799 = vmatpush1.msra.mxu0 0.0
    %1800 = vmatprep.subr.mxu0 0.0
    %1801 = vmatpush1.msra.mxu0 0.0
    %1802 = vmatprep.subr.mxu0 0.0
    %1803 = vmatpush1.msra.mxu0 0.0
    %1804 = vmatprep.subr.mxu0 0.0
    %1805 = vmatpush1.msra.mxu0 0.0
    %1806 = vmatprep.subr.mxu0 0.0
    %1807 = vmatpush1.msra.mxu0 0.0
    %1808 = vmatprep.subr.mxu0 0.0
    %1809 = vmatpush1.msra.mxu0 0.0
    %1810 = vmatprep.subr.mxu0 0.0
    %1811 = vmatpush1.msra.mxu0 0.0
    %1812 = vmatprep.subr.mxu0 0.0
    %1813 = vmatpush1.msra.mxu0 0.0
    %1814 = vmatprep.subr.mxu0 0.0
    %1815 = vmatpush1.msra.mxu0 0.0
    %1816 = vmatprep.subr.mxu0 0.0
    %1817 = vmatpush1.msra.mxu0 0.0
    %1818 = vmatprep.mubr.f32.mxu0 0.0
    %1819 = vmatmul.mubr.f32.gmra.mrb[0].mxu0 %v386
    %v1820 = vpop.f32.mrb[0].mxu0
    %v1821 = vadd.f32 0.0, %v1820
    %v1822 = vpop.f32.mrb[0].mxu0
    %1823 = vmatprep.mubr.f32.mxu0 0.0
    %1824 = vmatmul.mubr.f32.gmra.mrb[0].mxu0 %v389
    %v1825 = vpop.f32.mrb[0].mxu0
    %v1826 = vadd.f32 0.0, %v1825
    %v1827 = vpop.f32.mrb[0].mxu0
    %1828 = vmatprep.mubr.f32.mxu0 0.0
    %1829 = vmatmul.mubr.f32.gmra.mrb[0].mxu0 %v392
    %v1830 = vpop.f32.mrb[0].mxu0
    %v1831 = vadd.f32 0.0, %v1830
    %v1832 = vpop.f32.mrb[0].mxu0
    %1833 = vmatprep.mubr.f32.mxu0 0.0
    %1834 = vmatmul.mubr.f32.gmra.mrb[0].mxu0 %v395
    %v1835 = vpop.f32.mrb[0].mxu0
    %v1836 = vadd.f32 0.0, %v1835
    %v1837 = vpop.f32.mrb[0].mxu0
    %1838 = vmatprep.mubr.f32.mxu0 0.0
    %1839 = vmatmul.mubr.f32.gmra.mrb[0].mxu0 %v398
    %v1840 = vpop.f32.mrb[0].mxu0
    %v1841 = vadd.f32 0.0, %v1840
    %v1842 = vpop.f32.mrb[0].mxu0
    %1843 = vdwg.mxu0
    %v1844 = vld [vmem:[%s21] sm:$0xff]
    %v1845 = vld [vmem:[%s21 + $0x8] sm:$0xff]
    %v1846 = vld [vmem:[%s21 + $0x10] sm:$0xff]
    %v1847 = vld [vmem:[%s21 + $0x18] sm:$0xff]
    %v1848 = vld [vmem:[%s21 + $0x20] sm:$0x3]
    %v1849 = vmul.f32 %v1821, %v1844
    %v1850 = vmul.f32 %v1826, %v1845
    %v1851 = vmul.f32 %v1831, %v1846
    %v1852 = vmul.f32 %v1836, %v1847
    %v1853 = vmul.f32 %v1841, %v1848
    %v1854 = vld [vmem:[%s22] sm:$0xff]
    %v1855 = vld [vmem:[%s22 + $0x8] sm:$0xff]
    %v1856 = vld [vmem:[%s22 + $0x10] sm:$0xff]
    %v1857 = vld [vmem:[%s22 + $0x18] sm:$0xff]
    %v1858 = vld [vmem:[%s22 + $0x20] sm:$0x3]
    %v1859 = vadd.f32 %v1849, %v1854
    %v1860 = vadd.f32 %v1850, %v1855
    %v1861 = vadd.f32 %v1851, %v1856
    %v1862 = vadd.f32 %v1852, %v1857
    %v1863 = vadd.f32 %v1853, %v1858
    %v1864 = vmax.f32 %v1859, 0.0
    %v1865 = vmax.f32 %v1860, 0.0
    %v1866 = vmax.f32 %v1861, 0.0
    %v1867 = vmax.f32 %v1862, 0.0
    %v1868 = vmax.f32 %v1863, 0.0
    %v1869 = vld [vmem:[#allocation21] sm:$0xff]
    %v1870 = vld [vmem:[#allocation21 + $0x8] sm:$0xff]
    %v1871 = vld [vmem:[#allocation21 + $0x10] sm:$0xff]
    %v1872 = vld [vmem:[#allocation21 + $0x18] sm:$0xff]
    %v1874 = vsel %vm954, %v1864, 0
    %v1877 = vsel %vm954, %v1865, 0
    %v1880 = vsel %vm954, %v1866, 0
    %v1883 = vsel %vm954, %v1867, 0
    %v1886 = vsel %vm954, %v1868, 0
    %1888 = vmatprep.subr.mxu0 0.0
    %1889 = vmatpush1.msra.mxu0 %v1869
    %1890 = vmatprep.subr.mxu0 0.0
    %1891 = vmatpush1.msra.mxu0 %v1870
    %1892 = vmatprep.subr.mxu0 0.0
    %1893 = vmatpush1.msra.mxu0 %v1871
    %1894 = vmatprep.subr.mxu0 0.0
    %1895 = vmatpush1.msra.mxu0 %v1872
    %1896 = vmatprep.subr.mxu0 0.0
    %1897 = vmatpush1.msra.mxu0 0.0
    %1898 = vmatprep.subr.mxu0 0.0
    %1899 = vmatpush1.msra.mxu0 0.0
    %1900 = vmatprep.subr.mxu0 0.0
    %1901 = vmatpush1.msra.mxu0 0.0
    %1902 = vmatprep.subr.mxu0 0.0
    %1903 = vmatpush1.msra.mxu0 0.0
    %1904 = vmatprep.subr.mxu0 0.0
    %1905 = vmatpush1.msra.mxu0 0.0
    %1906 = vmatprep.subr.mxu0 0.0
    %1907 = vmatpush1.msra.mxu0 0.0
    %1908 = vmatprep.subr.mxu0 0.0
    %1909 = vmatpush1.msra.mxu0 0.0
    %1910 = vmatprep.subr.mxu0 0.0
    %1911 = vmatpush1.msra.mxu0 0.0
    %1912 = vmatprep.subr.mxu0 0.0
    %1913 = vmatpush1.msra.mxu0 0.0
    %1914 = vmatprep.subr.mxu0 0.0
    %1915 = vmatpush1.msra.mxu0 0.0
    %1916 = vmatprep.subr.mxu0 0.0
    %1917 = vmatpush1.msra.mxu0 0.0
    %1918 = vmatprep.subr.mxu0 0.0
    %1919 = vmatpush1.msra.mxu0 0.0
    %1920 = vmatprep.subr.mxu0 0.0
    %1921 = vmatpush1.msra.mxu0 0.0
    %1922 = vmatprep.subr.mxu0 0.0
    %1923 = vmatpush1.msra.mxu0 0.0
    %1924 = vmatprep.subr.mxu0 0.0
    %1925 = vmatpush1.msra.mxu0 0.0
    %1926 = vmatprep.subr.mxu0 0.0
    %1927 = vmatpush1.msra.mxu0 0.0
    %1928 = vmatprep.subr.mxu0 0.0
    %1929 = vmatpush1.msra.mxu0 0.0
    %1930 = vmatprep.subr.mxu0 0.0
    %1931 = vmatpush1.msra.mxu0 0.0
    %1932 = vmatprep.subr.mxu0 0.0
    %1933 = vmatpush1.msra.mxu0 0.0
    %1934 = vmatprep.subr.mxu0 0.0
    %1935 = vmatpush1.msra.mxu0 0.0
    %1936 = vmatprep.subr.mxu0 0.0
    %1937 = vmatpush1.msra.mxu0 0.0
    %1938 = vmatprep.subr.mxu0 0.0
    %1939 = vmatpush1.msra.mxu0 0.0
    %1940 = vmatprep.subr.mxu0 0.0
    %1941 = vmatpush1.msra.mxu0 0.0
    %1942 = vmatprep.subr.mxu0 0.0
    %1943 = vmatpush1.msra.mxu0 0.0
    %1944 = vmatprep.subr.mxu0 0.0
    %1945 = vmatpush1.msra.mxu0 0.0
    %1946 = vmatprep.subr.mxu0 0.0
    %1947 = vmatpush1.msra.mxu0 0.0
    %1948 = vmatprep.subr.mxu0 0.0
    %1949 = vmatpush1.msra.mxu0 0.0
    %1950 = vmatprep.subr.mxu0 0.0
    %1951 = vmatpush1.msra.mxu0 0.0
    %1952 = vmatprep.mubr.f32.mxu0 0.0
    %1953 = vmatmul.mubr.f32.gmra.mrb[0].mxu0 %v1874
    %v1954 = vpop.f32.mrb[0].mxu0
    %v1955 = vadd.f32 0.0, %v1954
    %v1956 = vpop.f32.mrb[0].mxu0
    %1957 = vmatprep.mubr.f32.mxu0 0.0
    %1958 = vmatmul.mubr.f32.gmra.mrb[0].mxu0 %v1877
    %v1959 = vpop.f32.mrb[0].mxu0
    %v1960 = vadd.f32 0.0, %v1959
    %v1961 = vpop.f32.mrb[0].mxu0
    %1962 = vmatprep.mubr.f32.mxu0 0.0
    %1963 = vmatmul.mubr.f32.gmra.mrb[0].mxu0 %v1880
    %v1964 = vpop.f32.mrb[0].mxu0
    %v1965 = vadd.f32 0.0, %v1964
    %v1966 = vpop.f32.mrb[0].mxu0
    %1967 = vmatprep.mubr.f32.mxu0 0.0
    %1968 = vmatmul.mubr.f32.gmra.mrb[0].mxu0 %v1883
    %v1969 = vpop.f32.mrb[0].mxu0
    %v1970 = vadd.f32 0.0, %v1969
    %v1971 = vpop.f32.mrb[0].mxu0
    %1972 = vmatprep.mubr.f32.mxu0 0.0
    %1973 = vmatmul.mubr.f32.gmra.mrb[0].mxu0 %v1886
    %v1974 = vpop.f32.mrb[0].mxu0
    %v1975 = vadd.f32 0.0, %v1974
    %v1976 = vpop.f32.mrb[0].mxu0
    %1977 = vdwg.mxu0
    %v1979 = vsel %vm400, %v1975, 0
    %1981 = vmatprep.subr.mxu0 0.0
    %1982 = vmatpush1.msra.mxu0 %v1955
    %1983 = vmatprep.subr.mxu0 0.0
    %1984 = vmatpush1.msra.mxu0 %v1960
    %1985 = vmatprep.subr.mxu0 0.0
    %1986 = vmatpush1.msra.mxu0 %v1965
    %1987 = vmatprep.subr.mxu0 0.0
    %1988 = vmatpush1.msra.mxu0 %v1970
    %1989 = vmatprep.subr.mxu0 0.0
    %1990 = vmatpush1.msra.mxu0 %v1979
    %1991 = vmatprep.subr.mxu0 0.0
    %1992 = vmatpush1.msra.mxu0 0.0
    %1993 = vmatprep.subr.mxu0 0.0
    %1994 = vmatpush1.msra.mxu0 0.0
    %1995 = vmatprep.subr.mxu0 0.0
    %1996 = vmatpush1.msra.mxu0 0.0
    %1997 = vmatprep.subr.mxu0 0.0
    %1998 = vmatpush1.msra.mxu0 0.0
    %1999 = vmatprep.subr.mxu0 0.0
    %2000 = vmatpush1.msra.mxu0 0.0
    %2001 = vmatprep.subr.mxu0 0.0
    %2002 = vmatpush1.msra.mxu0 0.0
    %2003 = vmatprep.subr.mxu0 0.0
    %2004 = vmatpush1.msra.mxu0 0.0
    %2005 = vmatprep.subr.mxu0 0.0
    %2006 = vmatpush1.msra.mxu0 0.0
    %2007 = vmatprep.subr.mxu0 0.0
    %2008 = vmatpush1.msra.mxu0 0.0
    %2009 = vmatprep.subr.mxu0 0.0
    %2010 = vmatpush1.msra.mxu0 0.0
    %2011 = vmatprep.subr.mxu0 0.0
    %2012 = vmatpush1.msra.mxu0 0.0
    %2013 = vmatprep.subr.mxu0 0.0
    %2014 = vmatpush1.msra.mxu0 0.0
    %2015 = vmatprep.subr.mxu0 0.0
    %2016 = vmatpush1.msra.mxu0 0.0
    %2017 = vmatprep.subr.mxu0 0.0
    %2018 = vmatpush1.msra.mxu0 0.0
    %2019 = vmatprep.subr.mxu0 0.0
    %2020 = vmatpush1.msra.mxu0 0.0
    %2021 = vmatprep.subr.mxu0 0.0
    %2022 = vmatpush1.msra.mxu0 0.0
    %2023 = vmatprep.subr.mxu0 0.0
    %2024 = vmatpush1.msra.mxu0 0.0
    %2025 = vmatprep.subr.mxu0 0.0
    %2026 = vmatpush1.msra.mxu0 0.0
    %2027 = vmatprep.subr.mxu0 0.0
    %2028 = vmatpush1.msra.mxu0 0.0
    %2029 = vmatprep.subr.mxu0 0.0
    %2030 = vmatpush1.msra.mxu0 0.0
    %2031 = vmatprep.subr.mxu0 0.0
    %2032 = vmatpush1.msra.mxu0 0.0
    %2033 = vmatprep.subr.mxu0 0.0
    %2034 = vmatpush1.msra.mxu0 0.0
    %2035 = vmatprep.subr.mxu0 0.0
    %2036 = vmatpush1.msra.mxu0 0.0
    %2037 = vmatprep.subr.mxu0 0.0
    %2038 = vmatpush1.msra.mxu0 0.0
    %2039 = vmatprep.subr.mxu0 0.0
    %2040 = vmatpush1.msra.mxu0 0.0
    %2041 = vmatprep.subr.mxu0 0.0
    %2042 = vmatpush1.msra.mxu0 0.0
    %2043 = vmatprep.subr.mxu0 0.0
    %2044 = vmatpush1.msra.mxu0 0.0
    %2045 = vmatprep.mubr.f32.mxu0 0.0
    %2046 = vmatmul.mubr.f32.gmra.mrb[0].mxu0 %v386
    %v2047 = vpop.f32.mrb[0].mxu0
    %v2048 = vadd.f32 0.0, %v2047
    %v2049 = vpop.f32.mrb[0].mxu0
    %2050 = vmatprep.mubr.f32.mxu0 0.0
    %2051 = vmatmul.mubr.f32.gmra.mrb[0].mxu0 %v389
    %v2052 = vpop.f32.mrb[0].mxu0
    %v2053 = vadd.f32 0.0, %v2052
    %v2054 = vpop.f32.mrb[0].mxu0
    %2055 = vmatprep.mubr.f32.mxu0 0.0
    %2056 = vmatmul.mubr.f32.gmra.mrb[0].mxu0 %v392
    %v2057 = vpop.f32.mrb[0].mxu0
    %v2058 = vadd.f32 0.0, %v2057
    %v2059 = vpop.f32.mrb[0].mxu0
    %2060 = vmatprep.mubr.f32.mxu0 0.0
    %2061 = vmatmul.mubr.f32.gmra.mrb[0].mxu0 %v395
    %v2062 = vpop.f32.mrb[0].mxu0
    %v2063 = vadd.f32 0.0, %v2062
    %v2064 = vpop.f32.mrb[0].mxu0
    %2065 = vmatprep.mubr.f32.mxu0 0.0
    %2066 = vmatmul.mubr.f32.gmra.mrb[0].mxu0 %v398
    %v2067 = vpop.f32.mrb[0].mxu0
    %v2068 = vadd.f32 0.0, %v2067
    %v2069 = vpop.f32.mrb[0].mxu0
    %2070 = vdwg.mxu0
    %v2071 = vld [vmem:[%s24] sm:$0xff]
    %v2072 = vld [vmem:[%s24 + $0x8] sm:$0xff]
    %v2073 = vld [vmem:[%s24 + $0x10] sm:$0xff]
    %v2074 = vld [vmem:[%s24 + $0x18] sm:$0xff]
    %v2075 = vld [vmem:[%s24 + $0x20] sm:$0x3]
    %v2076 = vmul.f32 %v2048, %v2071
    %v2077 = vmul.f32 %v2053, %v2072
    %v2078 = vmul.f32 %v2058, %v2073
    %v2079 = vmul.f32 %v2063, %v2074
    %v2080 = vmul.f32 %v2068, %v2075
    %v2081 = vld [vmem:[%s25] sm:$0xff]
    %v2082 = vld [vmem:[%s25 + $0x8] sm:$0xff]
    %v2083 = vld [vmem:[%s25 + $0x10] sm:$0xff]
    %v2084 = vld [vmem:[%s25 + $0x18] sm:$0xff]
    %v2085 = vld [vmem:[%s25 + $0x20] sm:$0x3]
    %v2086 = vadd.f32 %v2076, %v2081
    %v2087 = vadd.f32 %v2077, %v2082
    %v2088 = vadd.f32 %v2078, %v2083
    %v2089 = vadd.f32 %v2079, %v2084
    %v2090 = vadd.f32 %v2080, %v2085
    %v2091 = vmax.f32 %v2086, 0.0
    %v2092 = vmax.f32 %v2087, 0.0
    %v2093 = vmax.f32 %v2088, 0.0
    %v2094 = vmax.f32 %v2089, 0.0
    %v2095 = vmax.f32 %v2090, 0.0
    %v2096 = vadd.f32 %v2091, %v1637
    %v2097 = vadd.f32 %v2092, %v1638
    %v2098 = vadd.f32 %v2093, %v1639
    %v2099 = vadd.f32 %v2094, %v1640
    %v2100 = vadd.f32 %v2095, %v1641
    %v2101 = vld [vmem:[%s26] sm:$0xff]
    %v2102 = vld [vmem:[%s26 + $0x8] sm:$0xff]
    %v2103 = vld [vmem:[%s26 + $0x10] sm:$0xff]
    %v2104 = vld [vmem:[%s26 + $0x18] sm:$0xff]
    %v2106 = vsel %vm954, %v2096, 0
    %v2109 = vsel %vm954, %v2097, 0
    %v2112 = vsel %vm954, %v2098, 0
    %v2115 = vsel %vm954, %v2099, 0
    %v2118 = vsel %vm954, %v2100, 0
    %2120 = vmatprep.subr.mxu0 0.0
    %2121 = vmatpush1.msra.mxu0 %v2101
    %2122 = vmatprep.subr.mxu0 0.0
    %2123 = vmatpush1.msra.mxu0 %v2102
    %2124 = vmatprep.subr.mxu0 0.0
    %2125 = vmatpush1.msra.mxu0 %v2103
    %2126 = vmatprep.subr.mxu0 0.0
    %2127 = vmatpush1.msra.mxu0 %v2104
    %2128 = vmatprep.subr.mxu0 0.0
    %2129 = vmatpush1.msra.mxu0 0.0
    %2130 = vmatprep.subr.mxu0 0.0
    %2131 = vmatpush1.msra.mxu0 0.0
    %2132 = vmatprep.subr.mxu0 0.0
    %2133 = vmatpush1.msra.mxu0 0.0
    %2134 = vmatprep.subr.mxu0 0.0
    %2135 = vmatpush1.msra.mxu0 0.0
    %2136 = vmatprep.subr.mxu0 0.0
    %2137 = vmatpush1.msra.mxu0 0.0
    %2138 = vmatprep.subr.mxu0 0.0
    %2139 = vmatpush1.msra.mxu0 0.0
    %2140 = vmatprep.subr.mxu0 0.0
    %2141 = vmatpush1.msra.mxu0 0.0
    %2142 = vmatprep.subr.mxu0 0.0
    %2143 = vmatpush1.msra.mxu0 0.0
    %2144 = vmatprep.subr.mxu0 0.0
    %2145 = vmatpush1.msra.mxu0 0.0
    %2146 = vmatprep.subr.mxu0 0.0
    %2147 = vmatpush1.msra.mxu0 0.0
    %2148 = vmatprep.subr.mxu0 0.0
    %2149 = vmatpush1.msra.mxu0 0.0
    %2150 = vmatprep.subr.mxu0 0.0
    %2151 = vmatpush1.msra.mxu0 0.0
    %2152 = vmatprep.subr.mxu0 0.0
    %2153 = vmatpush1.msra.mxu0 0.0
    %2154 = vmatprep.subr.mxu0 0.0
    %2155 = vmatpush1.msra.mxu0 0.0
    %2156 = vmatprep.subr.mxu0 0.0
    %2157 = vmatpush1.msra.mxu0 0.0
    %2158 = vmatprep.subr.mxu0 0.0
    %2159 = vmatpush1.msra.mxu0 0.0
    %2160 = vmatprep.subr.mxu0 0.0
    %2161 = vmatpush1.msra.mxu0 0.0
    %2162 = vmatprep.subr.mxu0 0.0
    %2163 = vmatpush1.msra.mxu0 0.0
    %2164 = vmatprep.subr.mxu0 0.0
    %2165 = vmatpush1.msra.mxu0 0.0
    %2166 = vmatprep.subr.mxu0 0.0
    %2167 = vmatpush1.msra.mxu0 0.0
    %2168 = vmatprep.subr.mxu0 0.0
    %2169 = vmatpush1.msra.mxu0 0.0
    %2170 = vmatprep.subr.mxu0 0.0
    %2171 = vmatpush1.msra.mxu0 0.0
    %2172 = vmatprep.subr.mxu0 0.0
    %2173 = vmatpush1.msra.mxu0 0.0
    %2174 = vmatprep.subr.mxu0 0.0
    %2175 = vmatpush1.msra.mxu0 0.0
    %2176 = vmatprep.subr.mxu0 0.0
    %2177 = vmatpush1.msra.mxu0 0.0
    %2178 = vmatprep.subr.mxu0 0.0
    %2179 = vmatpush1.msra.mxu0 0.0
    %2180 = vmatprep.subr.mxu0 0.0
    %2181 = vmatpush1.msra.mxu0 0.0
    %2182 = vmatprep.subr.mxu0 0.0
    %2183 = vmatpush1.msra.mxu0 0.0
    %2184 = vmatprep.mubr.f32.mxu0 0.0
    %2185 = vmatmul.mubr.f32.gmra.mrb[0].mxu0 %v2106
    %v2186 = vpop.f32.mrb[0].mxu0
    %v2187 = vadd.f32 0.0, %v2186
    %v2188 = vpop.f32.mrb[0].mxu0
    %2189 = vmatprep.mubr.f32.mxu0 0.0
    %2190 = vmatmul.mubr.f32.gmra.mrb[0].mxu0 %v2109
    %v2191 = vpop.f32.mrb[0].mxu0
    %v2192 = vadd.f32 0.0, %v2191
    %v2193 = vpop.f32.mrb[0].mxu0
    %2194 = vmatprep.mubr.f32.mxu0 0.0
    %2195 = vmatmul.mubr.f32.gmra.mrb[0].mxu0 %v2112
    %v2196 = vpop.f32.mrb[0].mxu0
    %v2197 = vadd.f32 0.0, %v2196
    %v2198 = vpop.f32.mrb[0].mxu0
    %2199 = vmatprep.mubr.f32.mxu0 0.0
    %2200 = vmatmul.mubr.f32.gmra.mrb[0].mxu0 %v2115
    %v2201 = vpop.f32.mrb[0].mxu0
    %v2202 = vadd.f32 0.0, %v2201
    %v2203 = vpop.f32.mrb[0].mxu0
    %2204 = vmatprep.mubr.f32.mxu0 0.0
    %2205 = vmatmul.mubr.f32.gmra.mrb[0].mxu0 %v2118
    %v2206 = vpop.f32.mrb[0].mxu0
    %v2207 = vadd.f32 0.0, %v2206
    %v2208 = vpop.f32.mrb[0].mxu0
    %2209 = vdwg.mxu0
    %v2210 = vld [vmem:[%s27] sm:$0x1]
    %v2212 = vlaneseq
    %v2213 = vshrl.u32 %v2212, 7
    %v2214 = vsub.s32 0, %v2213
    %v2215 = vrot.slane %v2210, %v2214
    %v2218 = vsel %vm400, %v2207, 0
    %2220 = vmatprep.subr.mxu0 0.0
    %2221 = vmatpush1.msra.mxu0 %v2187
    %2222 = vmatprep.subr.mxu0 0.0
    %2223 = vmatpush1.msra.mxu0 %v2192
    %2224 = vmatprep.subr.mxu0 0.0
    %2225 = vmatpush1.msra.mxu0 %v2197
    %2226 = vmatprep.subr.mxu0 0.0
    %2227 = vmatpush1.msra.mxu0 %v2202
    %2228 = vmatprep.subr.mxu0 0.0
    %2229 = vmatpush1.msra.mxu0 %v2218
    %2230 = vmatprep.subr.mxu0 0.0
    %2231 = vmatpush1.msra.mxu0 0.0
    %2232 = vmatprep.subr.mxu0 0.0
    %2233 = vmatpush1.msra.mxu0 0.0
    %2234 = vmatprep.subr.mxu0 0.0
    %2235 = vmatpush1.msra.mxu0 0.0
    %2236 = vmatprep.subr.mxu0 0.0
    %2237 = vmatpush1.msra.mxu0 0.0
    %2238 = vmatprep.subr.mxu0 0.0
    %2239 = vmatpush1.msra.mxu0 0.0
    %2240 = vmatprep.subr.mxu0 0.0
    %2241 = vmatpush1.msra.mxu0 0.0
    %2242 = vmatprep.subr.mxu0 0.0
    %2243 = vmatpush1.msra.mxu0 0.0
    %2244 = vmatprep.subr.mxu0 0.0
    %2245 = vmatpush1.msra.mxu0 0.0
    %2246 = vmatprep.subr.mxu0 0.0
    %2247 = vmatpush1.msra.mxu0 0.0
    %2248 = vmatprep.subr.mxu0 0.0
    %2249 = vmatpush1.msra.mxu0 0.0
    %2250 = vmatprep.subr.mxu0 0.0
    %2251 = vmatpush1.msra.mxu0 0.0
    %2252 = vmatprep.subr.mxu0 0.0
    %2253 = vmatpush1.msra.mxu0 0.0
    %2254 = vmatprep.subr.mxu0 0.0
    %2255 = vmatpush1.msra.mxu0 0.0
    %2256 = vmatprep.subr.mxu0 0.0
    %2257 = vmatpush1.msra.mxu0 0.0
    %2258 = vmatprep.subr.mxu0 0.0
    %2259 = vmatpush1.msra.mxu0 0.0
    %2260 = vmatprep.subr.mxu0 0.0
    %2261 = vmatpush1.msra.mxu0 0.0
    %2262 = vmatprep.subr.mxu0 0.0
    %2263 = vmatpush1.msra.mxu0 0.0
    %2264 = vmatprep.subr.mxu0 0.0
    %2265 = vmatpush1.msra.mxu0 0.0
    %2266 = vmatprep.subr.mxu0 0.0
    %2267 = vmatpush1.msra.mxu0 0.0
    %2268 = vmatprep.subr.mxu0 0.0
    %2269 = vmatpush1.msra.mxu0 0.0
    %2270 = vmatprep.subr.mxu0 0.0
    %2271 = vmatpush1.msra.mxu0 0.0
    %2272 = vmatprep.subr.mxu0 0.0
    %2273 = vmatpush1.msra.mxu0 0.0
    %2274 = vmatprep.subr.mxu0 0.0
    %2275 = vmatpush1.msra.mxu0 0.0
    %2276 = vmatprep.subr.mxu0 0.0
    %2277 = vmatpush1.msra.mxu0 0.0
    %2278 = vmatprep.subr.mxu0 0.0
    %2279 = vmatpush1.msra.mxu0 0.0
    %2280 = vmatprep.subr.mxu0 0.0
    %2281 = vmatpush1.msra.mxu0 0.0
    %2282 = vmatprep.subr.mxu0 0.0
    %2283 = vmatpush1.msra.mxu0 0.0
    %2284 = vmatprep.mubr.f32.mxu0 0.0
    %2285 = vmatmul.mubr.f32.gmra.mrb[0].mxu0 %v386
    %v2286 = vpop.f32.mrb[0].mxu0
    %v2287 = vadd.f32 %v2215, %v2286
    %v2288 = vpop.f32.mrb[0].mxu0
    %2289 = vmatprep.mubr.f32.mxu0 0.0
    %2290 = vmatmul.mubr.f32.gmra.mrb[0].mxu0 %v389
    %v2291 = vpop.f32.mrb[0].mxu0
    %v2292 = vadd.f32 %v2215, %v2291
    %v2293 = vpop.f32.mrb[0].mxu0
    %2294 = vmatprep.mubr.f32.mxu0 0.0
    %2295 = vmatmul.mubr.f32.gmra.mrb[0].mxu0 %v392
    %v2296 = vpop.f32.mrb[0].mxu0
    %v2297 = vadd.f32 %v2215, %v2296
    %v2298 = vpop.f32.mrb[0].mxu0
    %2299 = vmatprep.mubr.f32.mxu0 0.0
    %2300 = vmatmul.mubr.f32.gmra.mrb[0].mxu0 %v395
    %v2301 = vpop.f32.mrb[0].mxu0
    %v2302 = vadd.f32 %v2215, %v2301
    %v2303 = vpop.f32.mrb[0].mxu0
    %2304 = vmatprep.mubr.f32.mxu0 0.0
    %2305 = vmatmul.mubr.f32.gmra.mrb[0].mxu0 %v398
    %v2306 = vpop.f32.mrb[0].mxu0
    %v2307 = vadd.f32 %v2215, %v2306
    %v2308 = vpop.f32.mrb[0].mxu0
    %2309 = vdwg.mxu0
    %2310 = vst.msk [vmem:[%s28] sm:$0xff] %vm521, %v2287
    %2311 = vst.msk [vmem:[%s28 + $0x8] sm:$0xff] %vm521, %v2292
    %2312 = vst.msk [vmem:[%s28 + $0x10] sm:$0xff] %vm521, %v2297
    %2313 = vst.msk [vmem:[%s28 + $0x18] sm:$0xff] %vm521, %v2302
    %vm2314 = vcmask 123904
    %2315 = vst.msk [vmem:[%s28 + $0x20] sm:$0x3] %vm2314, %v2307
    // Predicated region
    $region166: #{_lambda_.1} parent=1 // pred_check
      _
    $region167: #{_lambda_.1} parent=1 // pred_check_branch
      %2317 = sbr.rel (0) target = $region169
    $region168: #{_lambda_.1} parent=1 // pred_region
      _
    $region169: #{_lambda_.1} parent=1 // pred_fallthru
      _
    // Predicated region
    $region170: #{_lambda_.1} parent=1 // pred_check
      _
    $region171: #{_lambda_.1} parent=1 // pred_check_branch
      %2319 = sbr.rel (0) target = $region173
    $region172: #{_lambda_.1} parent=1 // pred_region
      _
    $region173: #{_lambda_.1} parent=1 // pred_fallthru
      _
    %2320 = vsyncpa [#allocation3], 1
    %2321 = vsyncpa [#allocation5], 1
    %2322 = vsyncpa [#allocation8], 1
    %2323 = vsyncpa [#allocation11], 1
    %2324 = vsyncpa [#allocation14], 1
    %2325 = vsyncpa [#allocation17], 1
    %2326 = vsyncpa [#allocation20], 1

</llo_original>
